<compile_context>
chip_gen: v5e
topology: v5e:2x2
jax: 0.10.0
libtpu: 0.0.40
codegen_flags: <defaults>
</compile_context>

<pallas_src>
import jax
import jax.numpy as jnp
from jax.experimental import pallas as pl
from jax.experimental.pallas import tpu as pltpu


def _vae_encoder_kernel(x_ref, w1_ref, b1_ref, w23_ref, b23_ref, eps_ref,
                        z_ref, klrow_ref):
    # x: [TB, 784] bf16, w1: [784, 512] bf16, b1: [1, 512] f32
    L = eps_ref.shape[-1]

    # Layer 1 on the MXU (bf16 operands, f32 accumulation), bias+ReLU in f32.
    h = jnp.dot(x_ref[...], w1_ref[...], preferred_element_type=jnp.float32)
    h = jnp.maximum(h + b1_ref[...], 0.0)

    # Fused layer 2+3: one [512, 2L] GEMM; mu = [:, :L], log_sigma = [:, L:].
    mo = jnp.dot(h.astype(jnp.bfloat16), w23_ref[...],
                 preferred_element_type=jnp.float32) + b23_ref[...]
    mu = mo[:, :L]
    log_sigma = mo[:, L:]
    sigma = jnp.exp(log_sigma)                        # EUP, f32

    # Reparameterization: z = mu + sigma * eps
    z_ref[...] = (mu + sigma * eps_ref[...]).astype(z_ref.dtype)

    # Per-row KL contribution; log(sigma) == log_sigma exactly.
    kl_terms = sigma * sigma + mu * mu - log_sigma - 0.5
    klrow_ref[...] = jnp.sum(kl_terms, axis=-1, keepdims=True)


def _round_up(x, m):
    return ((x + m - 1) // m) * m


def vae_encoder_forward(x_nchw, params, eps, *, tile_b=256):
    """x_nchw: [B, 1, 28, 28] f32; eps: [B, L] f32 ~ N(0,1). Returns (z, kl)."""
    B = x_nchw.shape[0]
    w1, b1, w2, b2, w3, b3 = params
    L = w2.shape[1]

    # Reshape([1, 28*28]) + bf16 cast of the matmul operands.
    x_flat = x_nchw.reshape(B, 28 * 28).astype(jnp.bfloat16)
    w1_bf = w1.astype(jnp.bfloat16)
    b1_f = b1.astype(jnp.float32)
    # Fuse linear2 / linear3 into a single [512, 2L] GEMM.
    w23 = jnp.concatenate([w2, w3], axis=1).astype(jnp.bfloat16)
    b23 = jnp.concatenate([b2, b3], axis=1).astype(jnp.float32)
    eps = eps.astype(jnp.float32)

    # Batch tile: multiple of 8 sublanes, capped at tile_b (default 256 = MXU
    # M dim on v6e/v7x). Pad the batch to a whole number of tiles.
    tb = _round_up(min(tile_b, _round_up(B, 8)), 8)
    b_pad = _round_up(B, tb)
    if b_pad != B:
        x_flat = jnp.pad(x_flat, ((0, b_pad - B), (0, 0)))
        eps = jnp.pad(eps, ((0, b_pad - B), (0, 0)))
    num_tiles = b_pad // tb

    z_pad, kl_rows = pl.pallas_call(
        _vae_encoder_kernel,
        out_shape=(
            jax.ShapeDtypeStruct((b_pad, L), jnp.float32),
            jax.ShapeDtypeStruct((b_pad, 1), jnp.float32),
        ),
        grid=(num_tiles,),
        in_specs=[
            pl.BlockSpec((tb, 28 * 28), lambda i: (i, 0)),     # x tile (pipelined)
            pl.BlockSpec((28 * 28, 512), lambda i: (0, 0)),    # w1  (VMEM-resident)
            pl.BlockSpec((1, 512), lambda i: (0, 0)),          # b1
            pl.BlockSpec((512, 2 * L), lambda i: (0, 0)),      # w2||w3
            pl.BlockSpec((1, 2 * L), lambda i: (0, 0)),        # b2||b3
            pl.BlockSpec((tb, L), lambda i: (i, 0)),           # eps tile
        ],
        out_specs=(
            pl.BlockSpec((tb, L), lambda i: (i, 0)),           # z
            pl.BlockSpec((tb, 1), lambda i: (i, 0)),           # per-row KL
        ),
        compiler_params=pltpu.CompilerParams(
            dimension_semantics=("parallel",),                 # v7x: 2 TCs
        ),
    )(x_flat, w1_bf, b1_f, w23, b23, eps)

    z = z_pad[:B]
    kl = jnp.sum(kl_rows[:B, 0])     # padded rows excluded by the slice
    return z, kl


def init_params(key, latent_dims):
    """Deterministic init matching nn.Linear shapes (weights stored transposed)."""
    ks = jax.random.split(key, 6)

    def uniform(k, shape, fan_in):
        bound = 1.0 / jnp.sqrt(float(fan_in))
        return jax.random.uniform(k, shape, jnp.float32, -bound, bound)

    w1 = uniform(ks[0], (28 * 28, 512), 28 * 28)              # linear1.weight.T
    b1 = uniform(ks[1], (1, 512), 28 * 28)                    # linear1.bias
    w2 = uniform(ks[2], (512, latent_dims), 512)              # linear2.weight.T
    b2 = uniform(ks[3], (1, latent_dims), 512)                # linear2.bias
    w3 = uniform(ks[4], (512, latent_dims), 512)              # linear3.weight.T
    b3 = uniform(ks[5], (1, latent_dims), 512)                # linear3.bias
    return (w1, b1, w2, b2, w3, b3)


if __name__ == "__main__":
    latent_dims = 16
    B = 8

    key = jax.random.PRNGKey(0)
    k_x, k_p, k_eps = jax.random.split(key, 3)

    x = jax.random.normal(k_x, (B, 1, 28, 28), jnp.float32)   # NCHW, like MNIST
    params = init_params(k_p, latent_dims)
    eps = jax.random.normal(k_eps, (B, latent_dims), jnp.float32)  # N.sample(mu.shape)

    z, kl = vae_encoder_forward(x, params, eps)
    jax.block_until_ready((z, kl))

    # Plain-JAX reference with the same bf16-operand / f32-accumulate numerics.
    w1, b1, w2, b2, w3, b3 = params
    xf = x.reshape(B, 784)
    h_ref = jnp.maximum(
        jnp.dot(xf.astype(jnp.bfloat16), w1.astype(jnp.bfloat16),
                preferred_element_type=jnp.float32) + b1, 0.0)
    w23_ref = jnp.concatenate([w2, w3], axis=1).astype(jnp.bfloat16)
    b23_ref = jnp.concatenate([b2, b3], axis=1)
    mo_ref = jnp.dot(h_ref.astype(jnp.bfloat16), w23_ref,
                     preferred_element_type=jnp.float32) + b23_ref
    mu_ref = mo_ref[:, :latent_dims]
    ls_ref = mo_ref[:, latent_dims:]
    sig_ref = jnp.exp(ls_ref)
    z_ref = mu_ref + sig_ref * eps
    kl_ref = jnp.sum(sig_ref ** 2 + mu_ref ** 2 - ls_ref - 0.5)

    assert z.shape == (B, latent_dims)
    assert jnp.allclose(z, z_ref, rtol=1e-2, atol=1e-2), "z mismatch"
    assert jnp.allclose(kl, kl_ref, rtol=1e-2, atol=1e-1), "kl mismatch"

    print("KERNEL_OK")
</pallas_src>

<mosaic_0001>
module attributes {stable_mosaic.version = 11 : i64} {
  func.func @_vae_encoder_kernel(%arg0: i32, %arg1: memref<8x784xbf16, #tpu.memory_space<vmem>>, %arg2: memref<784x512xbf16, #tpu.memory_space<vmem>>, %arg3: memref<1x512xf32, #tpu.memory_space<vmem>>, %arg4: memref<512x32xbf16, #tpu.memory_space<vmem>>, %arg5: memref<1x32xf32, #tpu.memory_space<vmem>>, %arg6: memref<8x16xf32, #tpu.memory_space<vmem>>, %arg7: memref<8x16xf32, #tpu.memory_space<vmem>>, %arg8: memref<8x1xf32, #tpu.memory_space<vmem>>) attributes {dimension_semantics = [#tpu.dimension_semantics<parallel>], iteration_bounds = array<i64: 1>, scalar_prefetch = 0 : i64, scratch_operands = 0 : i64, tpu.core_type = #tpu.core_type<tc>, window_params = [{transform_indices = @transform_0, window_bounds = array<i64: 8, 784>}, {pipeline_mode = #tpu.pipeline_mode<synchronous>, transform_indices = @transform_1, window_bounds = array<i64: 784, 512>}, {pipeline_mode = #tpu.pipeline_mode<synchronous>, transform_indices = @transform_2, window_bounds = array<i64: 1, 512>}, {pipeline_mode = #tpu.pipeline_mode<synchronous>, transform_indices = @transform_3, window_bounds = array<i64: 512, 32>}, {pipeline_mode = #tpu.pipeline_mode<synchronous>, transform_indices = @transform_4, window_bounds = array<i64: 1, 32>}, {transform_indices = @transform_5, window_bounds = array<i64: 8, 16>}, {transform_indices = @transform_6, window_bounds = array<i64: 8, 16>}, {transform_indices = @transform_7, window_bounds = array<i64: 8, 1>}]} {
    %c0 = arith.constant 0 : index
    %c0_0 = arith.constant 0 : index
    %0 = vector.load %arg1[%c0, %c0_0] : memref<8x784xbf16, #tpu.memory_space<vmem>>, vector<8x784xbf16>
    %c0_1 = arith.constant 0 : index
    %c0_2 = arith.constant 0 : index
    %1 = vector.load %arg2[%c0_1, %c0_2] : memref<784x512xbf16, #tpu.memory_space<vmem>>, vector<784x512xbf16>
    %cst = arith.constant dense<0.000000e+00> : vector<8x512xf32>
    %2 = tpu.matmul %0, %1, %cst {dimension_numbers = #tpu.dot_dimension_numbers<[1], [0], [0], [1], [0, 0, 1, 1], [], []>} : vector<8x784xbf16>, vector<784x512xbf16>, vector<8x512xf32> -> vector<8x512xf32>
    %c0_3 = arith.constant 0 : index
    %c0_4 = arith.constant 0 : index
    %3 = vector.load %arg3[%c0_3, %c0_4] : memref<1x512xf32, #tpu.memory_space<vmem>>, vector<1x512xf32>
    %4 = vector.broadcast %3 : vector<1x512xf32> to vector<8x512xf32>
    %5 = arith.addf %2, %4 : vector<8x512xf32>
    %cst_5 = arith.constant 0.000000e+00 : f32
    %6 = vector.broadcast %cst_5 : f32 to vector<8x512xf32>
    %7 = arith.maximumf %5, %6 : vector<8x512xf32>
    %8 = arith.truncf %7 : vector<8x512xf32> to vector<8x512xbf16>
    %c0_6 = arith.constant 0 : index
    %c0_7 = arith.constant 0 : index
    %9 = vector.load %arg4[%c0_6, %c0_7] : memref<512x32xbf16, #tpu.memory_space<vmem>>, vector<512x32xbf16>
    %cst_8 = arith.constant dense<0.000000e+00> : vector<8x32xf32>
    %10 = tpu.matmul %8, %9, %cst_8 {dimension_numbers = #tpu.dot_dimension_numbers<[1], [0], [0], [1], [0, 0, 1, 1], [], []>} : vector<8x512xbf16>, vector<512x32xbf16>, vector<8x32xf32> -> vector<8x32xf32>
    %c0_9 = arith.constant 0 : index
    %c0_10 = arith.constant 0 : index
    %11 = vector.load %arg5[%c0_9, %c0_10] : memref<1x32xf32, #tpu.memory_space<vmem>>, vector<1x32xf32>
    %12 = vector.broadcast %11 : vector<1x32xf32> to vector<8x32xf32>
    %13 = arith.addf %10, %12 : vector<8x32xf32>
    %14 = vector.extract_strided_slice %13 {offsets = [0, 0], sizes = [8, 16], strides = [1, 1]} : vector<8x32xf32> to vector<8x16xf32>
    %15 = vector.extract_strided_slice %13 {offsets = [0, 16], sizes = [8, 16], strides = [1, 1]} : vector<8x32xf32> to vector<8x16xf32>
    %16 = math.exp %15 : vector<8x16xf32>
    %c0_11 = arith.constant 0 : index
    %c0_12 = arith.constant 0 : index
    %17 = vector.load %arg6[%c0_11, %c0_12] : memref<8x16xf32, #tpu.memory_space<vmem>>, vector<8x16xf32>
    %18 = arith.mulf %16, %17 : vector<8x16xf32>
    %19 = arith.addf %14, %18 : vector<8x16xf32>
    %c0_13 = arith.constant 0 : index
    %c0_14 = arith.constant 0 : index
    %20 = vector.load %arg7[%c0_13, %c0_14] : memref<8x16xf32, #tpu.memory_space<vmem>>, vector<8x16xf32>
    tpu.vector_store %arg7[%c0_13, %c0_14], %19 {strides = array<i32>} : memref<8x16xf32, #tpu.memory_space<vmem>>, vector<8x16xf32>,
    %21 = arith.mulf %16, %16 : vector<8x16xf32>
    %22 = arith.mulf %14, %14 : vector<8x16xf32>
    %23 = arith.addf %21, %22 : vector<8x16xf32>
    %24 = arith.subf %23, %15 : vector<8x16xf32>
    %cst_15 = arith.constant 5.000000e-01 : f32
    %25 = vector.broadcast %cst_15 : f32 to vector<8x16xf32>
    %26 = arith.subf %24, %25 : vector<8x16xf32>
    %cst_16 = arith.constant dense<0.000000e+00> : vector<8xf32>
    %27 = vector.multi_reduction <add>, %26, %cst_16 [1] : vector<8x16xf32> to vector<8xf32>
    %28 = vector.shape_cast %27 : vector<8xf32> to vector<8x1xf32>
    %c0_17 = arith.constant 0 : index
    %c0_18 = arith.constant 0 : index
    %29 = vector.load %arg8[%c0_17, %c0_18] : memref<8x1xf32, #tpu.memory_space<vmem>>, vector<8x1xf32>
    tpu.vector_store %arg8[%c0_17, %c0_18], %28 {strides = array<i32>} : memref<8x1xf32, #tpu.memory_space<vmem>>, vector<8x1xf32>,
    return
  }
  func.func @transform_0(%arg0: i32) -> (i32, i32) {
    %c0_i32 = arith.constant 0 : i32
    %c0_i32_0 = arith.constant 0 : i32
    return %arg0, %c0_i32 : i32, i32
  }
  func.func @transform_1(%arg0: i32) -> (i32, i32) {
    %c0_i32 = arith.constant 0 : i32
    %c0_i32_0 = arith.constant 0 : i32
    %c0_i32_1 = arith.constant 0 : i32
    return %c0_i32, %c0_i32_0 : i32, i32
  }
  func.func @transform_2(%arg0: i32) -> (i32, i32) {
    %c0_i32 = arith.constant 0 : i32
    %c0_i32_0 = arith.constant 0 : i32
    %c0_i32_1 = arith.constant 0 : i32
    return %c0_i32, %c0_i32_0 : i32, i32
  }
  func.func @transform_3(%arg0: i32) -> (i32, i32) {
    %c0_i32 = arith.constant 0 : i32
    %c0_i32_0 = arith.constant 0 : i32
    %c0_i32_1 = arith.constant 0 : i32
    return %c0_i32, %c0_i32_0 : i32, i32
  }
  func.func @transform_4(%arg0: i32) -> (i32, i32) {
    %c0_i32 = arith.constant 0 : i32
    %c0_i32_0 = arith.constant 0 : i32
    %c0_i32_1 = arith.constant 0 : i32
    return %c0_i32, %c0_i32_0 : i32, i32
  }
  func.func @transform_5(%arg0: i32) -> (i32, i32) {
    %c0_i32 = arith.constant 0 : i32
    %c0_i32_0 = arith.constant 0 : i32
    return %arg0, %c0_i32 : i32, i32
  }
  func.func @transform_6(%arg0: i32) -> (i32, i32) {
    %c0_i32 = arith.constant 0 : i32
    %c0_i32_0 = arith.constant 0 : i32
    return %arg0, %c0_i32 : i32, i32
  }
  func.func @transform_7(%arg0: i32) -> (i32, i32) {
    %c0_i32 = arith.constant 0 : i32
    %c0_i32_0 = arith.constant 0 : i32
    return %arg0, %c0_i32 : i32, i32
  }
}

</mosaic_0001>

<llo_original>
// kernel: tpu_custom_call.1
$region0: #{tpu_custom_call.1}
  #allocation0 [shape = 'u32[]', space=smem, size = 0x4, offset = 0x4, fixed_abs, tag = 'smem constant byte address 0x4 - core index']
  #allocation1 [shape = 'u32[72,128]{1,0:T(1,128)}', space=vmem, size = 0x9000, scoped, tag = 'internal scratch']
  %s0 = inlined_call_operand.vmem [shape: bf16[8,784], index: 0, kind: input, shape index: {}]
  %s1 = inlined_call_operand.hbm [shape: bf16[784,512], index: 1, kind: input, shape index: {}]
  %s2 = inlined_call_operand.vmem [shape: f32[1,512], index: 2, kind: input, shape index: {}]
  %s3 = inlined_call_operand.vmem [shape: bf16[512,32], index: 3, kind: input, shape index: {}]
  %s4 = inlined_call_operand.vmem [shape: f32[1,32], index: 4, kind: input, shape index: {}]
  %s5 = inlined_call_operand.vmem [shape: f32[8,16], index: 5, kind: input, shape index: {}]
  %s6 = inlined_call_operand.hbm [shape: f32[8,16], index: 6, kind: output, shape index: {0}]
  %s7 = inlined_call_operand.vmem [shape: f32[8,1], index: 7, kind: output, shape index: {1}]
  %8 = xla_tuple %s6, %s7
  %s9 = sld [smem:[#allocation0]]
  $region46: #{tpu_custom_call.1} parent=0
    _
  %s11 = ssub.s32 1, %s9
  %s12 = scalar_select 0, %s11, %s9
  $region1: #{tpu_custom_call.1} parent=0
    #allocation2 [shape = 'u8[802816]{0}', space=vmem, size = 0xc4000, scoped, tag = 'input window, operand 1, single buffered']
    #allocation3 [shape = 's32[1]{0}', space=sflag, size = 0x4, scoped, tag = 'scoped memory for tpu_custom_call.1']
    #allocation4 [shape = 's32[1]{0}', space=sflag, size = 0x4, scoped, tag = 'scoped memory for tpu_custom_call.1']
    #allocation5 [shape = 'u8[4096]{0}', space=vmem, size = 0x1000, scoped, tag = 'output window, operand 0, single buffered']
    %13 = vsyncpa [#allocation3], 0
    %14 = vsyncpa [#allocation4], 0
    // Predicated region
    $region2: #{tpu_custom_call.1} parent=1 // pred_check
      _
    $region3: #{tpu_custom_call.1} parent=1 // pred_check_branch
      %16 = sbr.rel (0) target = $region5
    $region4: #{tpu_custom_call.1} parent=1 // pred_region
      _
    $region5: #{tpu_custom_call.1} parent=1 // pred_fallthru
      _
    // Predicated region
    $region6: #{tpu_custom_call.1} parent=1 // pred_check
      _
    $region7: #{tpu_custom_call.1} parent=1 // pred_check_branch
      %18 = sbr.rel (0) target = $region9
    $region8: #{tpu_custom_call.1} parent=1 // pred_region
      %20 = vsyncadd [#allocation3], 0
      %s21 = sshll.u32 %s1, 4
      %s22 = int_to_ptr.hbm [resolvable:$true] %s21
      %s23 = sshll.u32 [#allocation2], 4
      %s24 = int_to_ptr.vmem [resolvable:$true] %s23
      %29 = dma.hbm_to_vmem [thread:$0]  %s22, 25088, %s24, [#allocation3], 256, 256, 16
    $region9: #{tpu_custom_call.1} parent=1 // pred_fallthru
      _
    // Predicated region
    $region10: #{tpu_custom_call.1} parent=1 // pred_check
      _
    $region11: #{tpu_custom_call.1} parent=1 // pred_check_branch
      %31 = sbr.rel (0) target = $region13
    $region12: #{tpu_custom_call.1} parent=1 // pred_region
      _
    $region13: #{tpu_custom_call.1} parent=1 // pred_fallthru
      _
    // Predicated region
    $region14: #{tpu_custom_call.1} parent=1 // pred_check
      _
    $region15: #{tpu_custom_call.1} parent=1 // pred_check_branch
      %33 = sbr.rel (0) target = $region17
    $region16: #{tpu_custom_call.1} parent=1 // pred_region
      _
    $region17: #{tpu_custom_call.1} parent=1 // pred_fallthru
      _
    // Predicated region
    $region18: #{tpu_custom_call.1} parent=1 // pred_check
      _
    $region19: #{tpu_custom_call.1} parent=1 // pred_check_branch
      %35 = sbr.rel (0) target = $region21
    $region20: #{tpu_custom_call.1} parent=1 // pred_region
      _
    $region21: #{tpu_custom_call.1} parent=1 // pred_fallthru
      _
    // Predicated region
    $region22: #{tpu_custom_call.1} parent=1 // pred_check
      _
    $region23: #{tpu_custom_call.1} parent=1 // pred_check_branch
      %37 = sbr.rel (0) target = $region25
    $region24: #{tpu_custom_call.1} parent=1 // pred_region
      _
    $region25: #{tpu_custom_call.1} parent=1 // pred_fallthru
      _
    // Predicated region
    $region26: #{tpu_custom_call.1} parent=1 // pred_check
      _
    $region27: #{tpu_custom_call.1} parent=1 // pred_check_branch
      %39 = sbr.rel (0) target = $region29
    $region28: #{tpu_custom_call.1} parent=1 // pred_region
      %41 = dma.done [#allocation3], 25088
    $region29: #{tpu_custom_call.1} parent=1 // pred_fallthru
      _
    %v43 = vld [vmem:[%s0] sm:$0xff]
    %v44 = vld [vmem:[%s0 + $0x8] sm:$0xff]
    %v45 = vld [vmem:[%s0 + $0x10] sm:$0xff]
    %v46 = vld [vmem:[%s0 + $0x18] sm:$0xf]
    %v47 = vld [vmem:[#allocation2] sm:$0xff]
    %v48 = vld [vmem:[#allocation2 + $0x8] sm:$0xff]
    %v49 = vld [vmem:[#allocation2 + $0x10] sm:$0xff]
    %v50 = vld [vmem:[#allocation2 + $0x18] sm:$0xff]
    %v51 = vld [vmem:[#allocation2 + $0x20] sm:$0xff]
    %v52 = vld [vmem:[#allocation2 + $0x28] sm:$0xff]
    %v53 = vld [vmem:[#allocation2 + $0x30] sm:$0xff]
    %v54 = vld [vmem:[#allocation2 + $0x38] sm:$0xff]
    %v55 = vld [vmem:[#allocation2 + $0x40] sm:$0xff]
    %v56 = vld [vmem:[#allocation2 + $0x48] sm:$0xff]
    %v57 = vld [vmem:[#allocation2 + $0x50] sm:$0xff]
    %v58 = vld [vmem:[#allocation2 + $0x58] sm:$0xff]
    %v59 = vld [vmem:[#allocation2 + $0x60] sm:$0xff]
    %v60 = vld [vmem:[#allocation2 + $0x68] sm:$0xff]
    %v61 = vld [vmem:[#allocation2 + $0x70] sm:$0xff]
    %v62 = vld [vmem:[#allocation2 + $0x78] sm:$0xff]
    %v63 = vld [vmem:[#allocation2 + $0x80] sm:$0xff]
    %v64 = vld [vmem:[#allocation2 + $0x88] sm:$0xff]
    %v65 = vld [vmem:[#allocation2 + $0x90] sm:$0xff]
    %v66 = vld [vmem:[#allocation2 + $0x98] sm:$0xff]
    %v67 = vld [vmem:[#allocation2 + $0xa0] sm:$0xff]
    %v68 = vld [vmem:[#allocation2 + $0xa8] sm:$0xff]
    %v69 = vld [vmem:[#allocation2 + $0xb0] sm:$0xff]
    %v70 = vld [vmem:[#allocation2 + $0xb8] sm:$0xff]
    %v71 = vld [vmem:[#allocation2 + $0xc0] sm:$0xff]
    %v72 = vld [vmem:[#allocation2 + $0xc8] sm:$0xff]
    %v73 = vld [vmem:[#allocation2 + $0xd0] sm:$0xff]
    %v74 = vld [vmem:[#allocation2 + $0xd8] sm:$0xff]
    %v75 = vld [vmem:[#allocation2 + $0xe0] sm:$0xff]
    %v76 = vld [vmem:[#allocation2 + $0xe8] sm:$0xff]
    %v77 = vld [vmem:[#allocation2 + $0xf0] sm:$0xff]
    %v78 = vld [vmem:[#allocation2 + $0xf8] sm:$0xff]
    %v79 = vld [vmem:[#allocation2 + $0x100] sm:$0xff]
    %v80 = vld [vmem:[#allocation2 + $0x108] sm:$0xff]
    %v81 = vld [vmem:[#allocation2 + $0x110] sm:$0xff]
    %v82 = vld [vmem:[#allocation2 + $0x118] sm:$0xff]
    %v83 = vld [vmem:[#allocation2 + $0x120] sm:$0xff]
    %v84 = vld [vmem:[#allocation2 + $0x128] sm:$0xff]
    %v85 = vld [vmem:[#allocation2 + $0x130] sm:$0xff]
    %v86 = vld [vmem:[#allocation2 + $0x138] sm:$0xff]
    %v87 = vld [vmem:[#allocation2 + $0x140] sm:$0xff]
    %v88 = vld [vmem:[#allocation2 + $0x148] sm:$0xff]
    %v89 = vld [vmem:[#allocation2 + $0x150] sm:$0xff]
    %v90 = vld [vmem:[#allocation2 + $0x158] sm:$0xff]
    %v91 = vld [vmem:[#allocation2 + $0x160] sm:$0xff]
    %v92 = vld [vmem:[#allocation2 + $0x168] sm:$0xff]
    %v93 = vld [vmem:[#allocation2 + $0x170] sm:$0xff]
    %v94 = vld [vmem:[#allocation2 + $0x178] sm:$0xff]
    %v95 = vld [vmem:[#allocation2 + $0x180] sm:$0xff]
    %v96 = vld [vmem:[#allocation2 + $0x188] sm:$0xff]
    %v97 = vld [vmem:[#allocation2 + $0x190] sm:$0xff]
    %v98 = vld [vmem:[#allocation2 + $0x198] sm:$0xff]
    %v99 = vld [vmem:[#allocation2 + $0x1a0] sm:$0xff]
    %v100 = vld [vmem:[#allocation2 + $0x1a8] sm:$0xff]
    %v101 = vld [vmem:[#allocation2 + $0x1b0] sm:$0xff]
    %v102 = vld [vmem:[#allocation2 + $0x1b8] sm:$0xff]
    %v103 = vld [vmem:[#allocation2 + $0x1c0] sm:$0xff]
    %v104 = vld [vmem:[#allocation2 + $0x1c8] sm:$0xff]
    %v105 = vld [vmem:[#allocation2 + $0x1d0] sm:$0xff]
    %v106 = vld [vmem:[#allocation2 + $0x1d8] sm:$0xff]
    %v107 = vld [vmem:[#allocation2 + $0x1e0] sm:$0xff]
    %v108 = vld [vmem:[#allocation2 + $0x1e8] sm:$0xff]
    %v109 = vld [vmem:[#allocation2 + $0x1f0] sm:$0xff]
    %v110 = vld [vmem:[#allocation2 + $0x1f8] sm:$0xff]
    %v111 = vld [vmem:[#allocation2 + $0x200] sm:$0xff]
    %v112 = vld [vmem:[#allocation2 + $0x208] sm:$0xff]
    %v113 = vld [vmem:[#allocation2 + $0x210] sm:$0xff]
    %v114 = vld [vmem:[#allocation2 + $0x218] sm:$0xff]
    %v115 = vld [vmem:[#allocation2 + $0x220] sm:$0xff]
    %v116 = vld [vmem:[#allocation2 + $0x228] sm:$0xff]
    %v117 = vld [vmem:[#allocation2 + $0x230] sm:$0xff]
    %v118 = vld [vmem:[#allocation2 + $0x238] sm:$0xff]
    %v119 = vld [vmem:[#allocation2 + $0x240] sm:$0xff]
    %v120 = vld [vmem:[#allocation2 + $0x248] sm:$0xff]
    %v121 = vld [vmem:[#allocation2 + $0x250] sm:$0xff]
    %v122 = vld [vmem:[#allocation2 + $0x258] sm:$0xff]
    %v123 = vld [vmem:[#allocation2 + $0x260] sm:$0xff]
    %v124 = vld [vmem:[#allocation2 + $0x268] sm:$0xff]
    %v125 = vld [vmem:[#allocation2 + $0x270] sm:$0xff]
    %v126 = vld [vmem:[#allocation2 + $0x278] sm:$0xff]
    %v127 = vld [vmem:[#allocation2 + $0x280] sm:$0xff]
    %v128 = vld [vmem:[#allocation2 + $0x288] sm:$0xff]
    %v129 = vld [vmem:[#allocation2 + $0x290] sm:$0xff]
    %v130 = vld [vmem:[#allocation2 + $0x298] sm:$0xff]
    %v131 = vld [vmem:[#allocation2 + $0x2a0] sm:$0xff]
    %v132 = vld [vmem:[#allocation2 + $0x2a8] sm:$0xff]
    %v133 = vld [vmem:[#allocation2 + $0x2b0] sm:$0xff]
    %v134 = vld [vmem:[#allocation2 + $0x2b8] sm:$0xff]
    %v135 = vld [vmem:[#allocation2 + $0x2c0] sm:$0xff]
    %v136 = vld [vmem:[#allocation2 + $0x2c8] sm:$0xff]
    %v137 = vld [vmem:[#allocation2 + $0x2d0] sm:$0xff]
    %v138 = vld [vmem:[#allocation2 + $0x2d8] sm:$0xff]
    %v139 = vld [vmem:[#allocation2 + $0x2e0] sm:$0xff]
    %v140 = vld [vmem:[#allocation2 + $0x2e8] sm:$0xff]
    %v141 = vld [vmem:[#allocation2 + $0x2f0] sm:$0xff]
    %v142 = vld [vmem:[#allocation2 + $0x2f8] sm:$0xff]
    %v143 = vld [vmem:[#allocation2 + $0x300] sm:$0xff]
    %v144 = vld [vmem:[#allocation2 + $0x308] sm:$0xff]
    %v145 = vld [vmem:[#allocation2 + $0x310] sm:$0xff]
    %v146 = vld [vmem:[#allocation2 + $0x318] sm:$0xff]
    %v147 = vld [vmem:[#allocation2 + $0x320] sm:$0xff]
    %v148 = vld [vmem:[#allocation2 + $0x328] sm:$0xff]
    %v149 = vld [vmem:[#allocation2 + $0x330] sm:$0xff]
    %v150 = vld [vmem:[#allocation2 + $0x338] sm:$0xff]
    %v151 = vld [vmem:[#allocation2 + $0x340] sm:$0xff]
    %v152 = vld [vmem:[#allocation2 + $0x348] sm:$0xff]
    %v153 = vld [vmem:[#allocation2 + $0x350] sm:$0xff]
    %v154 = vld [vmem:[#allocation2 + $0x358] sm:$0xff]
    %v155 = vld [vmem:[#allocation2 + $0x360] sm:$0xff]
    %v156 = vld [vmem:[#allocation2 + $0x368] sm:$0xff]
    %v157 = vld [vmem:[#allocation2 + $0x370] sm:$0xff]
    %v158 = vld [vmem:[#allocation2 + $0x378] sm:$0xff]
    %v159 = vld [vmem:[#allocation2 + $0x380] sm:$0xff]
    %v160 = vld [vmem:[#allocation2 + $0x388] sm:$0xff]
    %v161 = vld [vmem:[#allocation2 + $0x390] sm:$0xff]
    %v162 = vld [vmem:[#allocation2 + $0x398] sm:$0xff]
    %v163 = vld [vmem:[#allocation2 + $0x3a0] sm:$0xff]
    %v164 = vld [vmem:[#allocation2 + $0x3a8] sm:$0xff]
    %v165 = vld [vmem:[#allocation2 + $0x3b0] sm:$0xff]
    %v166 = vld [vmem:[#allocation2 + $0x3b8] sm:$0xff]
    %v167 = vld [vmem:[#allocation2 + $0x3c0] sm:$0xff]
    %v168 = vld [vmem:[#allocation2 + $0x3c8] sm:$0xff]
    %v169 = vld [vmem:[#allocation2 + $0x3d0] sm:$0xff]
    %v170 = vld [vmem:[#allocation2 + $0x3d8] sm:$0xff]
    %v171 = vld [vmem:[#allocation2 + $0x3e0] sm:$0xff]
    %v172 = vld [vmem:[#allocation2 + $0x3e8] sm:$0xff]
    %v173 = vld [vmem:[#allocation2 + $0x3f0] sm:$0xff]
    %v174 = vld [vmem:[#allocation2 + $0x3f8] sm:$0xff]
    %v175 = vld [vmem:[#allocation2 + $0x400] sm:$0xff]
    %v176 = vld [vmem:[#allocation2 + $0x408] sm:$0xff]
    %v177 = vld [vmem:[#allocation2 + $0x410] sm:$0xff]
    %v178 = vld [vmem:[#allocation2 + $0x418] sm:$0xff]
    %v179 = vld [vmem:[#allocation2 + $0x420] sm:$0xff]
    %v180 = vld [vmem:[#allocation2 + $0x428] sm:$0xff]
    %v181 = vld [vmem:[#allocation2 + $0x430] sm:$0xff]
    %v182 = vld [vmem:[#allocation2 + $0x438] sm:$0xff]
    %v183 = vld [vmem:[#allocation2 + $0x440] sm:$0xff]
    %v184 = vld [vmem:[#allocation2 + $0x448] sm:$0xff]
    %v185 = vld [vmem:[#allocation2 + $0x450] sm:$0xff]
    %v186 = vld [vmem:[#allocation2 + $0x458] sm:$0xff]
    %v187 = vld [vmem:[#allocation2 + $0x460] sm:$0xff]
    %v188 = vld [vmem:[#allocation2 + $0x468] sm:$0xff]
    %v189 = vld [vmem:[#allocation2 + $0x470] sm:$0xff]
    %v190 = vld [vmem:[#allocation2 + $0x478] sm:$0xff]
    %v191 = vld [vmem:[#allocation2 + $0x480] sm:$0xff]
    %v192 = vld [vmem:[#allocation2 + $0x488] sm:$0xff]
    %v193 = vld [vmem:[#allocation2 + $0x490] sm:$0xff]
    %v194 = vld [vmem:[#allocation2 + $0x498] sm:$0xff]
    %v195 = vld [vmem:[#allocation2 + $0x4a0] sm:$0xff]
    %v196 = vld [vmem:[#allocation2 + $0x4a8] sm:$0xff]
    %v197 = vld [vmem:[#allocation2 + $0x4b0] sm:$0xff]
    %v198 = vld [vmem:[#allocation2 + $0x4b8] sm:$0xff]
    %v199 = vld [vmem:[#allocation2 + $0x4c0] sm:$0xff]
    %v200 = vld [vmem:[#allocation2 + $0x4c8] sm:$0xff]
    %v201 = vld [vmem:[#allocation2 + $0x4d0] sm:$0xff]
    %v202 = vld [vmem:[#allocation2 + $0x4d8] sm:$0xff]
    %v203 = vld [vmem:[#allocation2 + $0x4e0] sm:$0xff]
    %v204 = vld [vmem:[#allocation2 + $0x4e8] sm:$0xff]
    %v205 = vld [vmem:[#allocation2 + $0x4f0] sm:$0xff]
    %v206 = vld [vmem:[#allocation2 + $0x4f8] sm:$0xff]
    %v207 = vld [vmem:[#allocation2 + $0x500] sm:$0xff]
    %v208 = vld [vmem:[#allocation2 + $0x508] sm:$0xff]
    %v209 = vld [vmem:[#allocation2 + $0x510] sm:$0xff]
    %v210 = vld [vmem:[#allocation2 + $0x518] sm:$0xff]
    %v211 = vld [vmem:[#allocation2 + $0x520] sm:$0xff]
    %v212 = vld [vmem:[#allocation2 + $0x528] sm:$0xff]
    %v213 = vld [vmem:[#allocation2 + $0x530] sm:$0xff]
    %v214 = vld [vmem:[#allocation2 + $0x538] sm:$0xff]
    %v215 = vld [vmem:[#allocation2 + $0x540] sm:$0xff]
    %v216 = vld [vmem:[#allocation2 + $0x548] sm:$0xff]
    %v217 = vld [vmem:[#allocation2 + $0x550] sm:$0xff]
    %v218 = vld [vmem:[#allocation2 + $0x558] sm:$0xff]
    %v219 = vld [vmem:[#allocation2 + $0x560] sm:$0xff]
    %v220 = vld [vmem:[#allocation2 + $0x568] sm:$0xff]
    %v221 = vld [vmem:[#allocation2 + $0x570] sm:$0xff]
    %v222 = vld [vmem:[#allocation2 + $0x578] sm:$0xff]
    %v223 = vld [vmem:[#allocation2 + $0x580] sm:$0xff]
    %v224 = vld [vmem:[#allocation2 + $0x588] sm:$0xff]
    %v225 = vld [vmem:[#allocation2 + $0x590] sm:$0xff]
    %v226 = vld [vmem:[#allocation2 + $0x598] sm:$0xff]
    %v227 = vld [vmem:[#allocation2 + $0x5a0] sm:$0xff]
    %v228 = vld [vmem:[#allocation2 + $0x5a8] sm:$0xff]
    %v229 = vld [vmem:[#allocation2 + $0x5b0] sm:$0xff]
    %v230 = vld [vmem:[#allocation2 + $0x5b8] sm:$0xff]
    %v231 = vld [vmem:[#allocation2 + $0x5c0] sm:$0xff]
    %v232 = vld [vmem:[#allocation2 + $0x5c8] sm:$0xff]
    %v233 = vld [vmem:[#allocation2 + $0x5d0] sm:$0xff]
    %v234 = vld [vmem:[#allocation2 + $0x5d8] sm:$0xff]
    %v235 = vld [vmem:[#allocation2 + $0x5e0] sm:$0xff]
    %v236 = vld [vmem:[#allocation2 + $0x5e8] sm:$0xff]
    %v237 = vld [vmem:[#allocation2 + $0x5f0] sm:$0xff]
    %v238 = vld [vmem:[#allocation2 + $0x5f8] sm:$0xff]
    %v239 = vld [vmem:[#allocation2 + $0x600] sm:$0xff]
    %v240 = vld [vmem:[#allocation2 + $0x608] sm:$0xff]
    %v241 = vld [vmem:[#allocation2 + $0x610] sm:$0xff]
    %v242 = vld [vmem:[#allocation2 + $0x618] sm:$0xff]
    %v243 = vld [vmem:[%s2] sm:$0xf]
    %v245 = vperm.slane %v243, 0
    %v246 = vperm.slane %v243, 1
    %v247 = vperm.slane %v243, 2
    %v248 = vperm.slane %v243, 3
    %v257 = vunpack.c.l.b16 %v43
    %v258 = vunpack.c.h.b16 %v43
    %v259 = vunpack.c.l.b16 %v44
    %v260 = vunpack.c.h.b16 %v44
    %v261 = vunpack.c.l.b16 %v45
    %v262 = vunpack.c.h.b16 %v45
    %v263 = vunpack.c.l.b16 %v46
    %v264 = vpack.c.b16 %v257, %v257
    %v265 = vpack.c.b16 %v258, %v258
    %v266 = vpack.c.b16 %v259, %v259
    %v267 = vpack.c.b16 %v260, %v260
    %v268 = vpack.c.b16 %v261, %v261
    %v269 = vpack.c.b16 %v262, %v262
    %v270 = vpack.c.b16 %v263, %v263
    %v473 = vunpack.c.l.b16 %v47
    %v474 = vunpack.c.h.b16 %v47
    %v475 = vunpack.c.l.b16 %v48
    %v476 = vunpack.c.h.b16 %v48
    %v477 = vunpack.c.l.b16 %v49
    %v478 = vunpack.c.h.b16 %v49
    %v479 = vunpack.c.l.b16 %v50
    %v480 = vunpack.c.h.b16 %v50
    %v481 = vunpack.c.l.b16 %v51
    %v482 = vunpack.c.h.b16 %v51
    %v483 = vunpack.c.l.b16 %v52
    %v484 = vunpack.c.h.b16 %v52
    %v485 = vunpack.c.l.b16 %v53
    %v486 = vunpack.c.h.b16 %v53
    %v487 = vunpack.c.l.b16 %v54
    %v488 = vunpack.c.h.b16 %v54
    %v489 = vunpack.c.l.b16 %v55
    %v490 = vunpack.c.h.b16 %v55
    %v491 = vunpack.c.l.b16 %v56
    %v492 = vunpack.c.h.b16 %v56
    %v493 = vunpack.c.l.b16 %v57
    %v494 = vunpack.c.h.b16 %v57
    %v495 = vunpack.c.l.b16 %v58
    %v496 = vunpack.c.h.b16 %v58
    %v497 = vunpack.c.l.b16 %v59
    %v498 = vunpack.c.h.b16 %v59
    %v499 = vunpack.c.l.b16 %v60
    %v500 = vunpack.c.h.b16 %v60
    %v501 = vunpack.c.l.b16 %v61
    %v502 = vunpack.c.h.b16 %v61
    %v503 = vunpack.c.l.b16 %v62
    %v504 = vunpack.c.h.b16 %v62
    %v505 = vunpack.c.l.b16 %v63
    %v506 = vunpack.c.h.b16 %v63
    %v507 = vunpack.c.l.b16 %v64
    %v508 = vunpack.c.h.b16 %v64
    %v509 = vunpack.c.l.b16 %v65
    %v510 = vunpack.c.h.b16 %v65
    %v511 = vunpack.c.l.b16 %v66
    %v512 = vunpack.c.h.b16 %v66
    %v513 = vunpack.c.l.b16 %v67
    %v514 = vunpack.c.h.b16 %v67
    %v515 = vunpack.c.l.b16 %v68
    %v516 = vunpack.c.h.b16 %v68
    %v517 = vunpack.c.l.b16 %v69
    %v518 = vunpack.c.h.b16 %v69
    %v519 = vunpack.c.l.b16 %v70
    %v520 = vunpack.c.h.b16 %v70
    %v521 = vunpack.c.l.b16 %v71
    %v522 = vunpack.c.h.b16 %v71
    %v523 = vunpack.c.l.b16 %v72
    %v524 = vunpack.c.h.b16 %v72
    %v525 = vunpack.c.l.b16 %v73
    %v526 = vunpack.c.h.b16 %v73
    %v527 = vunpack.c.l.b16 %v74
    %v528 = vunpack.c.h.b16 %v74
    %v529 = vunpack.c.l.b16 %v75
    %v530 = vunpack.c.h.b16 %v75
    %v531 = vunpack.c.l.b16 %v76
    %v532 = vunpack.c.h.b16 %v76
    %v533 = vunpack.c.l.b16 %v77
    %v534 = vunpack.c.h.b16 %v77
    %v535 = vunpack.c.l.b16 %v78
    %v536 = vunpack.c.h.b16 %v78
    %v537 = vunpack.c.l.b16 %v79
    %v538 = vunpack.c.h.b16 %v79
    %v539 = vunpack.c.l.b16 %v80
    %v540 = vunpack.c.h.b16 %v80
    %v541 = vunpack.c.l.b16 %v81
    %v542 = vunpack.c.h.b16 %v81
    %v543 = vunpack.c.l.b16 %v82
    %v544 = vunpack.c.h.b16 %v82
    %v545 = vunpack.c.l.b16 %v83
    %v546 = vunpack.c.h.b16 %v83
    %v547 = vunpack.c.l.b16 %v84
    %v548 = vunpack.c.h.b16 %v84
    %v549 = vunpack.c.l.b16 %v85
    %v550 = vunpack.c.h.b16 %v85
    %v551 = vunpack.c.l.b16 %v86
    %v552 = vunpack.c.h.b16 %v86
    %v553 = vunpack.c.l.b16 %v87
    %v554 = vunpack.c.h.b16 %v87
    %v555 = vunpack.c.l.b16 %v88
    %v556 = vunpack.c.h.b16 %v88
    %v557 = vunpack.c.l.b16 %v89
    %v558 = vunpack.c.h.b16 %v89
    %v559 = vunpack.c.l.b16 %v90
    %v560 = vunpack.c.h.b16 %v90
    %v561 = vunpack.c.l.b16 %v91
    %v562 = vunpack.c.h.b16 %v91
    %v563 = vunpack.c.l.b16 %v92
    %v564 = vunpack.c.h.b16 %v92
    %v565 = vunpack.c.l.b16 %v93
    %v566 = vunpack.c.h.b16 %v93
    %v567 = vunpack.c.l.b16 %v94
    %v568 = vunpack.c.h.b16 %v94
    %v569 = vunpack.c.l.b16 %v95
    %v570 = vunpack.c.h.b16 %v95
    %v571 = vunpack.c.l.b16 %v96
    %v572 = vunpack.c.h.b16 %v96
    %v573 = vunpack.c.l.b16 %v97
    %v574 = vunpack.c.h.b16 %v97
    %v575 = vunpack.c.l.b16 %v98
    %v576 = vunpack.c.h.b16 %v98
    %v577 = vunpack.c.l.b16 %v99
    %v578 = vunpack.c.h.b16 %v99
    %v579 = vunpack.c.l.b16 %v100
    %v580 = vunpack.c.h.b16 %v100
    %v581 = vunpack.c.l.b16 %v101
    %v582 = vunpack.c.h.b16 %v101
    %v583 = vunpack.c.l.b16 %v102
    %v584 = vunpack.c.h.b16 %v102
    %v585 = vunpack.c.l.b16 %v103
    %v586 = vunpack.c.h.b16 %v103
    %v587 = vunpack.c.l.b16 %v104
    %v588 = vunpack.c.h.b16 %v104
    %v589 = vunpack.c.l.b16 %v105
    %v590 = vunpack.c.h.b16 %v105
    %v591 = vunpack.c.l.b16 %v106
    %v592 = vunpack.c.h.b16 %v106
    %v593 = vunpack.c.l.b16 %v107
    %v594 = vunpack.c.h.b16 %v107
    %v595 = vunpack.c.l.b16 %v108
    %v596 = vunpack.c.h.b16 %v108
    %v597 = vunpack.c.l.b16 %v109
    %v598 = vunpack.c.h.b16 %v109
    %v599 = vunpack.c.l.b16 %v110
    %v600 = vunpack.c.h.b16 %v110
    %v601 = vunpack.c.l.b16 %v111
    %v602 = vunpack.c.h.b16 %v111
    %v603 = vunpack.c.l.b16 %v112
    %v604 = vunpack.c.h.b16 %v112
    %v605 = vunpack.c.l.b16 %v113
    %v606 = vunpack.c.h.b16 %v113
    %v607 = vunpack.c.l.b16 %v114
    %v608 = vunpack.c.h.b16 %v114
    %v609 = vunpack.c.l.b16 %v115
    %v610 = vunpack.c.h.b16 %v115
    %v611 = vunpack.c.l.b16 %v116
    %v612 = vunpack.c.h.b16 %v116
    %v613 = vunpack.c.l.b16 %v117
    %v614 = vunpack.c.h.b16 %v117
    %v615 = vunpack.c.l.b16 %v118
    %v616 = vunpack.c.h.b16 %v118
    %v617 = vunpack.c.l.b16 %v119
    %v618 = vunpack.c.h.b16 %v119
    %v619 = vunpack.c.l.b16 %v120
    %v620 = vunpack.c.h.b16 %v120
    %v621 = vunpack.c.l.b16 %v121
    %v622 = vunpack.c.h.b16 %v121
    %v623 = vunpack.c.l.b16 %v122
    %v624 = vunpack.c.h.b16 %v122
    %v625 = vunpack.c.l.b16 %v123
    %v626 = vunpack.c.h.b16 %v123
    %v627 = vunpack.c.l.b16 %v124
    %v628 = vunpack.c.h.b16 %v124
    %v629 = vunpack.c.l.b16 %v125
    %v630 = vunpack.c.h.b16 %v125
    %v631 = vunpack.c.l.b16 %v126
    %v632 = vunpack.c.h.b16 %v126
    %v633 = vunpack.c.l.b16 %v127
    %v634 = vunpack.c.h.b16 %v127
    %v635 = vunpack.c.l.b16 %v128
    %v636 = vunpack.c.h.b16 %v128
    %v637 = vunpack.c.l.b16 %v129
    %v638 = vunpack.c.h.b16 %v129
    %v639 = vunpack.c.l.b16 %v130
    %v640 = vunpack.c.h.b16 %v130
    %v641 = vunpack.c.l.b16 %v131
    %v642 = vunpack.c.h.b16 %v131
    %v643 = vunpack.c.l.b16 %v132
    %v644 = vunpack.c.h.b16 %v132
    %v645 = vunpack.c.l.b16 %v133
    %v646 = vunpack.c.h.b16 %v133
    %v647 = vunpack.c.l.b16 %v134
    %v648 = vunpack.c.h.b16 %v134
    %v649 = vunpack.c.l.b16 %v135
    %v650 = vunpack.c.h.b16 %v135
    %v651 = vunpack.c.l.b16 %v136
    %v652 = vunpack.c.h.b16 %v136
    %v653 = vunpack.c.l.b16 %v137
    %v654 = vunpack.c.h.b16 %v137
    %v655 = vunpack.c.l.b16 %v138
    %v656 = vunpack.c.h.b16 %v138
    %v657 = vunpack.c.l.b16 %v139
    %v658 = vunpack.c.h.b16 %v139
    %v659 = vunpack.c.l.b16 %v140
    %v660 = vunpack.c.h.b16 %v140
    %v661 = vunpack.c.l.b16 %v141
    %v662 = vunpack.c.h.b16 %v141
    %v663 = vunpack.c.l.b16 %v142
    %v664 = vunpack.c.h.b16 %v142
    %v665 = vunpack.c.l.b16 %v143
    %v666 = vunpack.c.h.b16 %v143
    %v667 = vunpack.c.l.b16 %v144
    %v668 = vunpack.c.h.b16 %v144
    %v669 = vunpack.c.l.b16 %v145
    %v670 = vunpack.c.h.b16 %v145
    %v671 = vunpack.c.l.b16 %v146
    %v672 = vunpack.c.h.b16 %v146
    %v673 = vunpack.c.l.b16 %v147
    %v674 = vunpack.c.h.b16 %v147
    %v675 = vunpack.c.l.b16 %v148
    %v676 = vunpack.c.h.b16 %v148
    %v677 = vunpack.c.l.b16 %v149
    %v678 = vunpack.c.h.b16 %v149
    %v679 = vunpack.c.l.b16 %v150
    %v680 = vunpack.c.h.b16 %v150
    %v681 = vunpack.c.l.b16 %v151
    %v682 = vunpack.c.h.b16 %v151
    %v683 = vunpack.c.l.b16 %v152
    %v684 = vunpack.c.h.b16 %v152
    %v685 = vunpack.c.l.b16 %v153
    %v686 = vunpack.c.h.b16 %v153
    %v687 = vunpack.c.l.b16 %v154
    %v688 = vunpack.c.h.b16 %v154
    %v689 = vunpack.c.l.b16 %v155
    %v690 = vunpack.c.h.b16 %v155
    %v691 = vunpack.c.l.b16 %v156
    %v692 = vunpack.c.h.b16 %v156
    %v693 = vunpack.c.l.b16 %v157
    %v694 = vunpack.c.h.b16 %v157
    %v695 = vunpack.c.l.b16 %v158
    %v696 = vunpack.c.h.b16 %v158
    %v697 = vunpack.c.l.b16 %v159
    %v698 = vunpack.c.h.b16 %v159
    %v699 = vunpack.c.l.b16 %v160
    %v700 = vunpack.c.h.b16 %v160
    %v701 = vunpack.c.l.b16 %v161
    %v702 = vunpack.c.h.b16 %v161
    %v703 = vunpack.c.l.b16 %v162
    %v704 = vunpack.c.h.b16 %v162
    %v705 = vunpack.c.l.b16 %v163
    %v706 = vunpack.c.h.b16 %v163
    %v707 = vunpack.c.l.b16 %v164
    %v708 = vunpack.c.h.b16 %v164
    %v709 = vunpack.c.l.b16 %v165
    %v710 = vunpack.c.h.b16 %v165
    %v711 = vunpack.c.l.b16 %v166
    %v712 = vunpack.c.h.b16 %v166
    %v713 = vunpack.c.l.b16 %v167
    %v714 = vunpack.c.h.b16 %v167
    %v715 = vunpack.c.l.b16 %v168
    %v716 = vunpack.c.h.b16 %v168
    %v717 = vunpack.c.l.b16 %v169
    %v718 = vunpack.c.h.b16 %v169
    %v719 = vunpack.c.l.b16 %v170
    %v720 = vunpack.c.h.b16 %v170
    %v721 = vunpack.c.l.b16 %v171
    %v722 = vunpack.c.h.b16 %v171
    %v723 = vunpack.c.l.b16 %v172
    %v724 = vunpack.c.h.b16 %v172
    %v725 = vunpack.c.l.b16 %v173
    %v726 = vunpack.c.h.b16 %v173
    %v727 = vunpack.c.l.b16 %v174
    %v728 = vunpack.c.h.b16 %v174
    %v729 = vunpack.c.l.b16 %v175
    %v730 = vunpack.c.h.b16 %v175
    %v731 = vunpack.c.l.b16 %v176
    %v732 = vunpack.c.h.b16 %v176
    %v733 = vunpack.c.l.b16 %v177
    %v734 = vunpack.c.h.b16 %v177
    %v735 = vunpack.c.l.b16 %v178
    %v736 = vunpack.c.h.b16 %v178
    %v737 = vunpack.c.l.b16 %v179
    %v738 = vunpack.c.h.b16 %v179
    %v739 = vunpack.c.l.b16 %v180
    %v740 = vunpack.c.h.b16 %v180
    %v741 = vunpack.c.l.b16 %v181
    %v742 = vunpack.c.h.b16 %v181
    %v743 = vunpack.c.l.b16 %v182
    %v744 = vunpack.c.h.b16 %v182
    %v745 = vunpack.c.l.b16 %v183
    %v746 = vunpack.c.h.b16 %v183
    %v747 = vunpack.c.l.b16 %v184
    %v748 = vunpack.c.h.b16 %v184
    %v749 = vunpack.c.l.b16 %v185
    %v750 = vunpack.c.h.b16 %v185
    %v751 = vunpack.c.l.b16 %v186
    %v752 = vunpack.c.h.b16 %v186
    %v753 = vunpack.c.l.b16 %v187
    %v754 = vunpack.c.h.b16 %v187
    %v755 = vunpack.c.l.b16 %v188
    %v756 = vunpack.c.h.b16 %v188
    %v757 = vunpack.c.l.b16 %v189
    %v758 = vunpack.c.h.b16 %v189
    %v759 = vunpack.c.l.b16 %v190
    %v760 = vunpack.c.h.b16 %v190
    %v761 = vunpack.c.l.b16 %v191
    %v762 = vunpack.c.h.b16 %v191
    %v763 = vunpack.c.l.b16 %v192
    %v764 = vunpack.c.h.b16 %v192
    %v765 = vunpack.c.l.b16 %v193
    %v766 = vunpack.c.h.b16 %v193
    %v767 = vunpack.c.l.b16 %v194
    %v768 = vunpack.c.h.b16 %v194
    %v769 = vunpack.c.l.b16 %v195
    %v770 = vunpack.c.h.b16 %v195
    %v771 = vunpack.c.l.b16 %v196
    %v772 = vunpack.c.h.b16 %v196
    %v773 = vunpack.c.l.b16 %v197
    %v774 = vunpack.c.h.b16 %v197
    %v775 = vunpack.c.l.b16 %v198
    %v776 = vunpack.c.h.b16 %v198
    %v777 = vunpack.c.l.b16 %v199
    %v778 = vunpack.c.h.b16 %v199
    %v779 = vunpack.c.l.b16 %v200
    %v780 = vunpack.c.h.b16 %v200
    %v781 = vunpack.c.l.b16 %v201
    %v782 = vunpack.c.h.b16 %v201
    %v783 = vunpack.c.l.b16 %v202
    %v784 = vunpack.c.h.b16 %v202
    %v785 = vunpack.c.l.b16 %v203
    %v786 = vunpack.c.h.b16 %v203
    %v787 = vunpack.c.l.b16 %v204
    %v788 = vunpack.c.h.b16 %v204
    %v789 = vunpack.c.l.b16 %v205
    %v790 = vunpack.c.h.b16 %v205
    %v791 = vunpack.c.l.b16 %v206
    %v792 = vunpack.c.h.b16 %v206
    %v793 = vunpack.c.l.b16 %v207
    %v794 = vunpack.c.h.b16 %v207
    %v795 = vunpack.c.l.b16 %v208
    %v796 = vunpack.c.h.b16 %v208
    %v797 = vunpack.c.l.b16 %v209
    %v798 = vunpack.c.h.b16 %v209
    %v799 = vunpack.c.l.b16 %v210
    %v800 = vunpack.c.h.b16 %v210
    %v801 = vunpack.c.l.b16 %v211
    %v802 = vunpack.c.h.b16 %v211
    %v803 = vunpack.c.l.b16 %v212
    %v804 = vunpack.c.h.b16 %v212
    %v805 = vunpack.c.l.b16 %v213
    %v806 = vunpack.c.h.b16 %v213
    %v807 = vunpack.c.l.b16 %v214
    %v808 = vunpack.c.h.b16 %v214
    %v809 = vunpack.c.l.b16 %v215
    %v810 = vunpack.c.h.b16 %v215
    %v811 = vunpack.c.l.b16 %v216
    %v812 = vunpack.c.h.b16 %v216
    %v813 = vunpack.c.l.b16 %v217
    %v814 = vunpack.c.h.b16 %v217
    %v815 = vunpack.c.l.b16 %v218
    %v816 = vunpack.c.h.b16 %v218
    %v817 = vunpack.c.l.b16 %v219
    %v818 = vunpack.c.h.b16 %v219
    %v819 = vunpack.c.l.b16 %v220
    %v820 = vunpack.c.h.b16 %v220
    %v821 = vunpack.c.l.b16 %v221
    %v822 = vunpack.c.h.b16 %v221
    %v823 = vunpack.c.l.b16 %v222
    %v824 = vunpack.c.h.b16 %v222
    %v825 = vunpack.c.l.b16 %v223
    %v826 = vunpack.c.h.b16 %v223
    %v827 = vunpack.c.l.b16 %v224
    %v828 = vunpack.c.h.b16 %v224
    %v829 = vunpack.c.l.b16 %v225
    %v830 = vunpack.c.h.b16 %v225
    %v831 = vunpack.c.l.b16 %v226
    %v832 = vunpack.c.h.b16 %v226
    %v833 = vunpack.c.l.b16 %v227
    %v834 = vunpack.c.h.b16 %v227
    %v835 = vunpack.c.l.b16 %v228
    %v836 = vunpack.c.h.b16 %v228
    %v837 = vunpack.c.l.b16 %v229
    %v838 = vunpack.c.h.b16 %v229
    %v839 = vunpack.c.l.b16 %v230
    %v840 = vunpack.c.h.b16 %v230
    %v841 = vunpack.c.l.b16 %v231
    %v842 = vunpack.c.h.b16 %v231
    %v843 = vunpack.c.l.b16 %v232
    %v844 = vunpack.c.h.b16 %v232
    %v845 = vunpack.c.l.b16 %v233
    %v846 = vunpack.c.h.b16 %v233
    %v847 = vunpack.c.l.b16 %v234
    %v848 = vunpack.c.h.b16 %v234
    %v849 = vunpack.c.l.b16 %v235
    %v850 = vunpack.c.h.b16 %v235
    %v851 = vunpack.c.l.b16 %v236
    %v852 = vunpack.c.h.b16 %v236
    %v853 = vunpack.c.l.b16 %v237
    %v854 = vunpack.c.h.b16 %v237
    %v855 = vunpack.c.l.b16 %v238
    %v856 = vunpack.c.h.b16 %v238
    %v857 = vunpack.c.l.b16 %v239
    %v858 = vunpack.c.h.b16 %v239
    %v859 = vunpack.c.l.b16 %v240
    %v860 = vunpack.c.h.b16 %v240
    %v861 = vunpack.c.l.b16 %v241
    %v862 = vunpack.c.h.b16 %v241
    %v863 = vunpack.c.l.b16 %v242
    %v864 = vunpack.c.h.b16 %v242
    %v865 = vpack.c.b16 %v477, %v473
    %v866 = vpack.c.b16 %v478, %v474
    %v867 = vpack.c.b16 %v479, %v475
    %v868 = vpack.c.b16 %v480, %v476
    %v869 = vpack.c.b16 %v485, %v481
    %v870 = vpack.c.b16 %v486, %v482
    %v871 = vpack.c.b16 %v487, %v483
    %v872 = vpack.c.b16 %v488, %v484
    %v873 = vpack.c.b16 %v493, %v489
    %v874 = vpack.c.b16 %v494, %v490
    %v875 = vpack.c.b16 %v495, %v491
    %v876 = vpack.c.b16 %v496, %v492
    %v877 = vpack.c.b16 %v501, %v497
    %v878 = vpack.c.b16 %v502, %v498
    %v879 = vpack.c.b16 %v503, %v499
    %v880 = vpack.c.b16 %v504, %v500
    %v881 = vpack.c.b16 %v509, %v505
    %v882 = vpack.c.b16 %v510, %v506
    %v883 = vpack.c.b16 %v511, %v507
    %v884 = vpack.c.b16 %v512, %v508
    %v885 = vpack.c.b16 %v517, %v513
    %v886 = vpack.c.b16 %v518, %v514
    %v887 = vpack.c.b16 %v519, %v515
    %v888 = vpack.c.b16 %v520, %v516
    %v889 = vpack.c.b16 %v525, %v521
    %v890 = vpack.c.b16 %v526, %v522
    %v891 = vpack.c.b16 %v527, %v523
    %v892 = vpack.c.b16 %v528, %v524
    %v893 = vpack.c.b16 %v533, %v529
    %v894 = vpack.c.b16 %v534, %v530
    %v895 = vpack.c.b16 %v535, %v531
    %v896 = vpack.c.b16 %v536, %v532
    %v897 = vpack.c.b16 %v541, %v537
    %v898 = vpack.c.b16 %v542, %v538
    %v899 = vpack.c.b16 %v543, %v539
    %v900 = vpack.c.b16 %v544, %v540
    %v901 = vpack.c.b16 %v549, %v545
    %v902 = vpack.c.b16 %v550, %v546
    %v903 = vpack.c.b16 %v551, %v547
    %v904 = vpack.c.b16 %v552, %v548
    %v905 = vpack.c.b16 %v557, %v553
    %v906 = vpack.c.b16 %v558, %v554
    %v907 = vpack.c.b16 %v559, %v555
    %v908 = vpack.c.b16 %v560, %v556
    %v909 = vpack.c.b16 %v565, %v561
    %v910 = vpack.c.b16 %v566, %v562
    %v911 = vpack.c.b16 %v567, %v563
    %v912 = vpack.c.b16 %v568, %v564
    %v913 = vpack.c.b16 %v573, %v569
    %v914 = vpack.c.b16 %v574, %v570
    %v915 = vpack.c.b16 %v575, %v571
    %v916 = vpack.c.b16 %v576, %v572
    %v917 = vpack.c.b16 %v581, %v577
    %v918 = vpack.c.b16 %v582, %v578
    %v919 = vpack.c.b16 %v583, %v579
    %v920 = vpack.c.b16 %v584, %v580
    %v921 = vpack.c.b16 %v589, %v585
    %v922 = vpack.c.b16 %v590, %v586
    %v923 = vpack.c.b16 %v591, %v587
    %v924 = vpack.c.b16 %v592, %v588
    %v925 = vpack.c.b16 %v597, %v593
    %v926 = vpack.c.b16 %v598, %v594
    %v927 = vpack.c.b16 %v599, %v595
    %v928 = vpack.c.b16 %v600, %v596
    %v929 = vpack.c.b16 %v605, %v601
    %v930 = vpack.c.b16 %v606, %v602
    %v931 = vpack.c.b16 %v607, %v603
    %v932 = vpack.c.b16 %v608, %v604
    %v933 = vpack.c.b16 %v613, %v609
    %v934 = vpack.c.b16 %v614, %v610
    %v935 = vpack.c.b16 %v615, %v611
    %v936 = vpack.c.b16 %v616, %v612
    %v937 = vpack.c.b16 %v621, %v617
    %v938 = vpack.c.b16 %v622, %v618
    %v939 = vpack.c.b16 %v623, %v619
    %v940 = vpack.c.b16 %v624, %v620
    %v941 = vpack.c.b16 %v629, %v625
    %v942 = vpack.c.b16 %v630, %v626
    %v943 = vpack.c.b16 %v631, %v627
    %v944 = vpack.c.b16 %v632, %v628
    %v945 = vpack.c.b16 %v637, %v633
    %v946 = vpack.c.b16 %v638, %v634
    %v947 = vpack.c.b16 %v639, %v635
    %v948 = vpack.c.b16 %v640, %v636
    %v949 = vpack.c.b16 %v645, %v641
    %v950 = vpack.c.b16 %v646, %v642
    %v951 = vpack.c.b16 %v647, %v643
    %v952 = vpack.c.b16 %v648, %v644
    %v953 = vpack.c.b16 %v653, %v649
    %v954 = vpack.c.b16 %v654, %v650
    %v955 = vpack.c.b16 %v655, %v651
    %v956 = vpack.c.b16 %v656, %v652
    %v957 = vpack.c.b16 %v661, %v657
    %v958 = vpack.c.b16 %v662, %v658
    %v959 = vpack.c.b16 %v663, %v659
    %v960 = vpack.c.b16 %v664, %v660
    %v961 = vpack.c.b16 %v669, %v665
    %v962 = vpack.c.b16 %v670, %v666
    %v963 = vpack.c.b16 %v671, %v667
    %v964 = vpack.c.b16 %v672, %v668
    %v965 = vpack.c.b16 %v677, %v673
    %v966 = vpack.c.b16 %v678, %v674
    %v967 = vpack.c.b16 %v679, %v675
    %v968 = vpack.c.b16 %v680, %v676
    %v969 = vpack.c.b16 %v685, %v681
    %v970 = vpack.c.b16 %v686, %v682
    %v971 = vpack.c.b16 %v687, %v683
    %v972 = vpack.c.b16 %v688, %v684
    %v973 = vpack.c.b16 %v693, %v689
    %v974 = vpack.c.b16 %v694, %v690
    %v975 = vpack.c.b16 %v695, %v691
    %v976 = vpack.c.b16 %v696, %v692
    %v977 = vpack.c.b16 %v701, %v697
    %v978 = vpack.c.b16 %v702, %v698
    %v979 = vpack.c.b16 %v703, %v699
    %v980 = vpack.c.b16 %v704, %v700
    %v981 = vpack.c.b16 %v709, %v705
    %v982 = vpack.c.b16 %v710, %v706
    %v983 = vpack.c.b16 %v711, %v707
    %v984 = vpack.c.b16 %v712, %v708
    %v985 = vpack.c.b16 %v717, %v713
    %v986 = vpack.c.b16 %v718, %v714
    %v987 = vpack.c.b16 %v719, %v715
    %v988 = vpack.c.b16 %v720, %v716
    %v989 = vpack.c.b16 %v725, %v721
    %v990 = vpack.c.b16 %v726, %v722
    %v991 = vpack.c.b16 %v727, %v723
    %v992 = vpack.c.b16 %v728, %v724
    %v993 = vpack.c.b16 %v733, %v729
    %v994 = vpack.c.b16 %v734, %v730
    %v995 = vpack.c.b16 %v735, %v731
    %v996 = vpack.c.b16 %v736, %v732
    %v997 = vpack.c.b16 %v741, %v737
    %v998 = vpack.c.b16 %v742, %v738
    %v999 = vpack.c.b16 %v743, %v739
    %v1000 = vpack.c.b16 %v744, %v740
    %v1001 = vpack.c.b16 %v749, %v745
    %v1002 = vpack.c.b16 %v750, %v746
    %v1003 = vpack.c.b16 %v751, %v747
    %v1004 = vpack.c.b16 %v752, %v748
    %v1005 = vpack.c.b16 %v757, %v753
    %v1006 = vpack.c.b16 %v758, %v754
    %v1007 = vpack.c.b16 %v759, %v755
    %v1008 = vpack.c.b16 %v760, %v756
    %v1009 = vpack.c.b16 %v765, %v761
    %v1010 = vpack.c.b16 %v766, %v762
    %v1011 = vpack.c.b16 %v767, %v763
    %v1012 = vpack.c.b16 %v768, %v764
    %v1013 = vpack.c.b16 %v773, %v769
    %v1014 = vpack.c.b16 %v774, %v770
    %v1015 = vpack.c.b16 %v775, %v771
    %v1016 = vpack.c.b16 %v776, %v772
    %v1017 = vpack.c.b16 %v781, %v777
    %v1018 = vpack.c.b16 %v782, %v778
    %v1019 = vpack.c.b16 %v783, %v779
    %v1020 = vpack.c.b16 %v784, %v780
    %v1021 = vpack.c.b16 %v789, %v785
    %v1022 = vpack.c.b16 %v790, %v786
    %v1023 = vpack.c.b16 %v791, %v787
    %v1024 = vpack.c.b16 %v792, %v788
    %v1025 = vpack.c.b16 %v797, %v793
    %v1026 = vpack.c.b16 %v798, %v794
    %v1027 = vpack.c.b16 %v799, %v795
    %v1028 = vpack.c.b16 %v800, %v796
    %v1029 = vpack.c.b16 %v805, %v801
    %v1030 = vpack.c.b16 %v806, %v802
    %v1031 = vpack.c.b16 %v807, %v803
    %v1032 = vpack.c.b16 %v808, %v804
    %v1033 = vpack.c.b16 %v813, %v809
    %v1034 = vpack.c.b16 %v814, %v810
    %v1035 = vpack.c.b16 %v815, %v811
    %v1036 = vpack.c.b16 %v816, %v812
    %v1037 = vpack.c.b16 %v821, %v817
    %v1038 = vpack.c.b16 %v822, %v818
    %v1039 = vpack.c.b16 %v823, %v819
    %v1040 = vpack.c.b16 %v824, %v820
    %v1041 = vpack.c.b16 %v829, %v825
    %v1042 = vpack.c.b16 %v830, %v826
    %v1043 = vpack.c.b16 %v831, %v827
    %v1044 = vpack.c.b16 %v832, %v828
    %v1045 = vpack.c.b16 %v837, %v833
    %v1046 = vpack.c.b16 %v838, %v834
    %v1047 = vpack.c.b16 %v839, %v835
    %v1048 = vpack.c.b16 %v840, %v836
    %v1049 = vpack.c.b16 %v845, %v841
    %v1050 = vpack.c.b16 %v846, %v842
    %v1051 = vpack.c.b16 %v847, %v843
    %v1052 = vpack.c.b16 %v848, %v844
    %v1053 = vpack.c.b16 %v853, %v849
    %v1054 = vpack.c.b16 %v854, %v850
    %v1055 = vpack.c.b16 %v855, %v851
    %v1056 = vpack.c.b16 %v856, %v852
    %v1057 = vpack.c.b16 %v861, %v857
    %v1058 = vpack.c.b16 %v862, %v858
    %v1059 = vpack.c.b16 %v863, %v859
    %v1060 = vpack.c.b16 %v864, %v860
    %vm1257 = vcmask 130048
    %v1259 = vsel %vm1257, %v270, 0
    %1261 = vmatpush.bf16.msra.mxu0 %v893
    %1262 = vmatpush.bf16.msra.mxu0 %v889
    %1263 = vmatpush.bf16.msra.mxu0 %v885
    %1264 = vmatpush.bf16.msra.mxu0 %v881
    %1265 = vmatpush.bf16.msra.mxu0 %v877
    %1266 = vmatpush.bf16.msra.mxu0 %v873
    %1267 = vmatpush.bf16.msra.mxu0 %v869
    %1268 = vmatpush.bf16.msra.mxu0 %v865
    %1269 = vmatmul.bf16.gmra.mxu0 %v264
    %v1270 = vpop.f32.mrf.mxu0
    %v1271 = vadd.f32 %v245, %v1270
    %v1272 = vpop.f32.mrf.mxu0
    %1273 = vdwg.mxu0
    %1274 = vmatpush.bf16.msra.mxu0 %v925
    %1275 = vmatpush.bf16.msra.mxu0 %v921
    %1276 = vmatpush.bf16.msra.mxu0 %v917
    %1277 = vmatpush.bf16.msra.mxu0 %v913
    %1278 = vmatpush.bf16.msra.mxu0 %v909
    %1279 = vmatpush.bf16.msra.mxu0 %v905
    %1280 = vmatpush.bf16.msra.mxu0 %v901
    %1281 = vmatpush.bf16.msra.mxu0 %v897
    %1282 = vmatmul.bf16.gmra.mxu0 %v265
    %v1283 = vpop.f32.mrf.mxu0
    %v1284 = vadd.f32 %v1271, %v1283
    %v1285 = vpop.f32.mrf.mxu0
    %1286 = vdwg.mxu0
    %1287 = vmatpush.bf16.msra.mxu0 %v957
    %1288 = vmatpush.bf16.msra.mxu0 %v953
    %1289 = vmatpush.bf16.msra.mxu0 %v949
    %1290 = vmatpush.bf16.msra.mxu0 %v945
    %1291 = vmatpush.bf16.msra.mxu0 %v941
    %1292 = vmatpush.bf16.msra.mxu0 %v937
    %1293 = vmatpush.bf16.msra.mxu0 %v933
    %1294 = vmatpush.bf16.msra.mxu0 %v929
    %1295 = vmatmul.bf16.gmra.mxu0 %v266
    %v1296 = vpop.f32.mrf.mxu0
    %v1297 = vadd.f32 %v1284, %v1296
    %v1298 = vpop.f32.mrf.mxu0
    %1299 = vdwg.mxu0
    %1300 = vmatpush.bf16.msra.mxu0 %v989
    %1301 = vmatpush.bf16.msra.mxu0 %v985
    %1302 = vmatpush.bf16.msra.mxu0 %v981
    %1303 = vmatpush.bf16.msra.mxu0 %v977
    %1304 = vmatpush.bf16.msra.mxu0 %v973
    %1305 = vmatpush.bf16.msra.mxu0 %v969
    %1306 = vmatpush.bf16.msra.mxu0 %v965
    %1307 = vmatpush.bf16.msra.mxu0 %v961
    %1308 = vmatmul.bf16.gmra.mxu0 %v267
    %v1309 = vpop.f32.mrf.mxu0
    %v1310 = vadd.f32 %v1297, %v1309
    %v1311 = vpop.f32.mrf.mxu0
    %1312 = vdwg.mxu0
    %1313 = vmatpush.bf16.msra.mxu0 %v1021
    %1314 = vmatpush.bf16.msra.mxu0 %v1017
    %1315 = vmatpush.bf16.msra.mxu0 %v1013
    %1316 = vmatpush.bf16.msra.mxu0 %v1009
    %1317 = vmatpush.bf16.msra.mxu0 %v1005
    %1318 = vmatpush.bf16.msra.mxu0 %v1001
    %1319 = vmatpush.bf16.msra.mxu0 %v997
    %1320 = vmatpush.bf16.msra.mxu0 %v993
    %1321 = vmatmul.bf16.gmra.mxu0 %v268
    %v1322 = vpop.f32.mrf.mxu0
    %v1323 = vadd.f32 %v1310, %v1322
    %v1324 = vpop.f32.mrf.mxu0
    %1325 = vdwg.mxu0
    %1326 = vmatpush.bf16.msra.mxu0 %v1053
    %1327 = vmatpush.bf16.msra.mxu0 %v1049
    %1328 = vmatpush.bf16.msra.mxu0 %v1045
    %1329 = vmatpush.bf16.msra.mxu0 %v1041
    %1330 = vmatpush.bf16.msra.mxu0 %v1037
    %1331 = vmatpush.bf16.msra.mxu0 %v1033
    %1332 = vmatpush.bf16.msra.mxu0 %v1029
    %1333 = vmatpush.bf16.msra.mxu0 %v1025
    %1334 = vmatmul.bf16.gmra.mxu0 %v269
    %v1335 = vpop.f32.mrf.mxu0
    %v1336 = vadd.f32 %v1323, %v1335
    %v1337 = vpop.f32.mrf.mxu0
    %1338 = vdwg.mxu0
    %1339 = vmatpush.bf16.msra.mxu0 0
    %1340 = vmatpush.bf16.msra.mxu0 0
    %1341 = vmatpush.bf16.msra.mxu0 0
    %1342 = vmatpush.bf16.msra.mxu0 0
    %1343 = vmatpush.bf16.msra.mxu0 0
    %1344 = vmatpush.bf16.msra.mxu0 0
    %1345 = vmatpush.bf16.msra.mxu0 0
    %1346 = vmatpush.bf16.msra.mxu0 %v1057
    %1347 = vmatmul.bf16.gmra.mxu0 %v1259
    %v1348 = vpop.f32.mrf.mxu0
    %v1349 = vadd.f32 %v1336, %v1348
    %v1350 = vpop.f32.mrf.mxu0
    %1351 = vdwg.mxu0
    %1352 = vmatpush.bf16.msra.mxu0 %v894
    %1353 = vmatpush.bf16.msra.mxu0 %v890
    %1354 = vmatpush.bf16.msra.mxu0 %v886
    %1355 = vmatpush.bf16.msra.mxu0 %v882
    %1356 = vmatpush.bf16.msra.mxu0 %v878
    %1357 = vmatpush.bf16.msra.mxu0 %v874
    %1358 = vmatpush.bf16.msra.mxu0 %v870
    %1359 = vmatpush.bf16.msra.mxu0 %v866
    %1360 = vmatmul.bf16.gmra.mxu0 %v264
    %v1361 = vpop.f32.mrf.mxu0
    %v1362 = vadd.f32 %v246, %v1361
    %v1363 = vpop.f32.mrf.mxu0
    %1364 = vdwg.mxu0
    %1365 = vmatpush.bf16.msra.mxu0 %v926
    %1366 = vmatpush.bf16.msra.mxu0 %v922
    %1367 = vmatpush.bf16.msra.mxu0 %v918
    %1368 = vmatpush.bf16.msra.mxu0 %v914
    %1369 = vmatpush.bf16.msra.mxu0 %v910
    %1370 = vmatpush.bf16.msra.mxu0 %v906
    %1371 = vmatpush.bf16.msra.mxu0 %v902
    %1372 = vmatpush.bf16.msra.mxu0 %v898
    %1373 = vmatmul.bf16.gmra.mxu0 %v265
    %v1374 = vpop.f32.mrf.mxu0
    %v1375 = vadd.f32 %v1362, %v1374
    %v1376 = vpop.f32.mrf.mxu0
    %1377 = vdwg.mxu0
    %1378 = vmatpush.bf16.msra.mxu0 %v958
    %1379 = vmatpush.bf16.msra.mxu0 %v954
    %1380 = vmatpush.bf16.msra.mxu0 %v950
    %1381 = vmatpush.bf16.msra.mxu0 %v946
    %1382 = vmatpush.bf16.msra.mxu0 %v942
    %1383 = vmatpush.bf16.msra.mxu0 %v938
    %1384 = vmatpush.bf16.msra.mxu0 %v934
    %1385 = vmatpush.bf16.msra.mxu0 %v930
    %1386 = vmatmul.bf16.gmra.mxu0 %v266
    %v1387 = vpop.f32.mrf.mxu0
    %v1388 = vadd.f32 %v1375, %v1387
    %v1389 = vpop.f32.mrf.mxu0
    %1390 = vdwg.mxu0
    %1391 = vmatpush.bf16.msra.mxu0 %v990
    %1392 = vmatpush.bf16.msra.mxu0 %v986
    %1393 = vmatpush.bf16.msra.mxu0 %v982
    %1394 = vmatpush.bf16.msra.mxu0 %v978
    %1395 = vmatpush.bf16.msra.mxu0 %v974
    %1396 = vmatpush.bf16.msra.mxu0 %v970
    %1397 = vmatpush.bf16.msra.mxu0 %v966
    %1398 = vmatpush.bf16.msra.mxu0 %v962
    %1399 = vmatmul.bf16.gmra.mxu0 %v267
    %v1400 = vpop.f32.mrf.mxu0
    %v1401 = vadd.f32 %v1388, %v1400
    %v1402 = vpop.f32.mrf.mxu0
    %1403 = vdwg.mxu0
    %1404 = vmatpush.bf16.msra.mxu0 %v1022
    %1405 = vmatpush.bf16.msra.mxu0 %v1018
    %1406 = vmatpush.bf16.msra.mxu0 %v1014
    %1407 = vmatpush.bf16.msra.mxu0 %v1010
    %1408 = vmatpush.bf16.msra.mxu0 %v1006
    %1409 = vmatpush.bf16.msra.mxu0 %v1002
    %1410 = vmatpush.bf16.msra.mxu0 %v998
    %1411 = vmatpush.bf16.msra.mxu0 %v994
    %1412 = vmatmul.bf16.gmra.mxu0 %v268
    %v1413 = vpop.f32.mrf.mxu0
    %v1414 = vadd.f32 %v1401, %v1413
    %v1415 = vpop.f32.mrf.mxu0
    %1416 = vdwg.mxu0
    %1417 = vmatpush.bf16.msra.mxu0 %v1054
    %1418 = vmatpush.bf16.msra.mxu0 %v1050
    %1419 = vmatpush.bf16.msra.mxu0 %v1046
    %1420 = vmatpush.bf16.msra.mxu0 %v1042
    %1421 = vmatpush.bf16.msra.mxu0 %v1038
    %1422 = vmatpush.bf16.msra.mxu0 %v1034
    %1423 = vmatpush.bf16.msra.mxu0 %v1030
    %1424 = vmatpush.bf16.msra.mxu0 %v1026
    %1425 = vmatmul.bf16.gmra.mxu0 %v269
    %v1426 = vpop.f32.mrf.mxu0
    %v1427 = vadd.f32 %v1414, %v1426
    %v1428 = vpop.f32.mrf.mxu0
    %1429 = vdwg.mxu0
    %1430 = vmatpush.bf16.msra.mxu0 0
    %1431 = vmatpush.bf16.msra.mxu0 0
    %1432 = vmatpush.bf16.msra.mxu0 0
    %1433 = vmatpush.bf16.msra.mxu0 0
    %1434 = vmatpush.bf16.msra.mxu0 0
    %1435 = vmatpush.bf16.msra.mxu0 0
    %1436 = vmatpush.bf16.msra.mxu0 0
    %1437 = vmatpush.bf16.msra.mxu0 %v1058
    %1438 = vmatmul.bf16.gmra.mxu0 %v1259
    %v1439 = vpop.f32.mrf.mxu0
    %v1440 = vadd.f32 %v1427, %v1439
    %v1441 = vpop.f32.mrf.mxu0
    %1442 = vdwg.mxu0
    %1443 = vmatpush.bf16.msra.mxu0 %v895
    %1444 = vmatpush.bf16.msra.mxu0 %v891
    %1445 = vmatpush.bf16.msra.mxu0 %v887
    %1446 = vmatpush.bf16.msra.mxu0 %v883
    %1447 = vmatpush.bf16.msra.mxu0 %v879
    %1448 = vmatpush.bf16.msra.mxu0 %v875
    %1449 = vmatpush.bf16.msra.mxu0 %v871
    %1450 = vmatpush.bf16.msra.mxu0 %v867
    %1451 = vmatmul.bf16.gmra.mxu0 %v264
    %v1452 = vpop.f32.mrf.mxu0
    %v1453 = vadd.f32 %v247, %v1452
    %v1454 = vpop.f32.mrf.mxu0
    %1455 = vdwg.mxu0
    %1456 = vmatpush.bf16.msra.mxu0 %v927
    %1457 = vmatpush.bf16.msra.mxu0 %v923
    %1458 = vmatpush.bf16.msra.mxu0 %v919
    %1459 = vmatpush.bf16.msra.mxu0 %v915
    %1460 = vmatpush.bf16.msra.mxu0 %v911
    %1461 = vmatpush.bf16.msra.mxu0 %v907
    %1462 = vmatpush.bf16.msra.mxu0 %v903
    %1463 = vmatpush.bf16.msra.mxu0 %v899
    %1464 = vmatmul.bf16.gmra.mxu0 %v265
    %v1465 = vpop.f32.mrf.mxu0
    %v1466 = vadd.f32 %v1453, %v1465
    %v1467 = vpop.f32.mrf.mxu0
    %1468 = vdwg.mxu0
    %1469 = vmatpush.bf16.msra.mxu0 %v959
    %1470 = vmatpush.bf16.msra.mxu0 %v955
    %1471 = vmatpush.bf16.msra.mxu0 %v951
    %1472 = vmatpush.bf16.msra.mxu0 %v947
    %1473 = vmatpush.bf16.msra.mxu0 %v943
    %1474 = vmatpush.bf16.msra.mxu0 %v939
    %1475 = vmatpush.bf16.msra.mxu0 %v935
    %1476 = vmatpush.bf16.msra.mxu0 %v931
    %1477 = vmatmul.bf16.gmra.mxu0 %v266
    %v1478 = vpop.f32.mrf.mxu0
    %v1479 = vadd.f32 %v1466, %v1478
    %v1480 = vpop.f32.mrf.mxu0
    %1481 = vdwg.mxu0
    %1482 = vmatpush.bf16.msra.mxu0 %v991
    %1483 = vmatpush.bf16.msra.mxu0 %v987
    %1484 = vmatpush.bf16.msra.mxu0 %v983
    %1485 = vmatpush.bf16.msra.mxu0 %v979
    %1486 = vmatpush.bf16.msra.mxu0 %v975
    %1487 = vmatpush.bf16.msra.mxu0 %v971
    %1488 = vmatpush.bf16.msra.mxu0 %v967
    %1489 = vmatpush.bf16.msra.mxu0 %v963
    %1490 = vmatmul.bf16.gmra.mxu0 %v267
    %v1491 = vpop.f32.mrf.mxu0
    %v1492 = vadd.f32 %v1479, %v1491
    %v1493 = vpop.f32.mrf.mxu0
    %1494 = vdwg.mxu0
    %1495 = vmatpush.bf16.msra.mxu0 %v1023
    %1496 = vmatpush.bf16.msra.mxu0 %v1019
    %1497 = vmatpush.bf16.msra.mxu0 %v1015
    %1498 = vmatpush.bf16.msra.mxu0 %v1011
    %1499 = vmatpush.bf16.msra.mxu0 %v1007
    %1500 = vmatpush.bf16.msra.mxu0 %v1003
    %1501 = vmatpush.bf16.msra.mxu0 %v999
    %1502 = vmatpush.bf16.msra.mxu0 %v995
    %1503 = vmatmul.bf16.gmra.mxu0 %v268
    %v1504 = vpop.f32.mrf.mxu0
    %v1505 = vadd.f32 %v1492, %v1504
    %v1506 = vpop.f32.mrf.mxu0
    %1507 = vdwg.mxu0
    %1508 = vmatpush.bf16.msra.mxu0 %v1055
    %1509 = vmatpush.bf16.msra.mxu0 %v1051
    %1510 = vmatpush.bf16.msra.mxu0 %v1047
    %1511 = vmatpush.bf16.msra.mxu0 %v1043
    %1512 = vmatpush.bf16.msra.mxu0 %v1039
    %1513 = vmatpush.bf16.msra.mxu0 %v1035
    %1514 = vmatpush.bf16.msra.mxu0 %v1031
    %1515 = vmatpush.bf16.msra.mxu0 %v1027
    %1516 = vmatmul.bf16.gmra.mxu0 %v269
    %v1517 = vpop.f32.mrf.mxu0
    %v1518 = vadd.f32 %v1505, %v1517
    %v1519 = vpop.f32.mrf.mxu0
    %1520 = vdwg.mxu0
    %1521 = vmatpush.bf16.msra.mxu0 0
    %1522 = vmatpush.bf16.msra.mxu0 0
    %1523 = vmatpush.bf16.msra.mxu0 0
    %1524 = vmatpush.bf16.msra.mxu0 0
    %1525 = vmatpush.bf16.msra.mxu0 0
    %1526 = vmatpush.bf16.msra.mxu0 0
    %1527 = vmatpush.bf16.msra.mxu0 0
    %1528 = vmatpush.bf16.msra.mxu0 %v1059
    %1529 = vmatmul.bf16.gmra.mxu0 %v1259
    %v1530 = vpop.f32.mrf.mxu0
    %v1531 = vadd.f32 %v1518, %v1530
    %v1532 = vpop.f32.mrf.mxu0
    %1533 = vdwg.mxu0
    %1534 = vmatpush.bf16.msra.mxu0 %v896
    %1535 = vmatpush.bf16.msra.mxu0 %v892
    %1536 = vmatpush.bf16.msra.mxu0 %v888
    %1537 = vmatpush.bf16.msra.mxu0 %v884
    %1538 = vmatpush.bf16.msra.mxu0 %v880
    %1539 = vmatpush.bf16.msra.mxu0 %v876
    %1540 = vmatpush.bf16.msra.mxu0 %v872
    %1541 = vmatpush.bf16.msra.mxu0 %v868
    %1542 = vmatmul.bf16.gmra.mxu0 %v264
    %v1543 = vpop.f32.mrf.mxu0
    %v1544 = vadd.f32 %v248, %v1543
    %v1545 = vpop.f32.mrf.mxu0
    %1546 = vdwg.mxu0
    %1547 = vmatpush.bf16.msra.mxu0 %v928
    %1548 = vmatpush.bf16.msra.mxu0 %v924
    %1549 = vmatpush.bf16.msra.mxu0 %v920
    %1550 = vmatpush.bf16.msra.mxu0 %v916
    %1551 = vmatpush.bf16.msra.mxu0 %v912
    %1552 = vmatpush.bf16.msra.mxu0 %v908
    %1553 = vmatpush.bf16.msra.mxu0 %v904
    %1554 = vmatpush.bf16.msra.mxu0 %v900
    %1555 = vmatmul.bf16.gmra.mxu0 %v265
    %v1556 = vpop.f32.mrf.mxu0
    %v1557 = vadd.f32 %v1544, %v1556
    %v1558 = vpop.f32.mrf.mxu0
    %1559 = vdwg.mxu0
    %1560 = vmatpush.bf16.msra.mxu0 %v960
    %1561 = vmatpush.bf16.msra.mxu0 %v956
    %1562 = vmatpush.bf16.msra.mxu0 %v952
    %1563 = vmatpush.bf16.msra.mxu0 %v948
    %1564 = vmatpush.bf16.msra.mxu0 %v944
    %1565 = vmatpush.bf16.msra.mxu0 %v940
    %1566 = vmatpush.bf16.msra.mxu0 %v936
    %1567 = vmatpush.bf16.msra.mxu0 %v932
    %1568 = vmatmul.bf16.gmra.mxu0 %v266
    %v1569 = vpop.f32.mrf.mxu0
    %v1570 = vadd.f32 %v1557, %v1569
    %v1571 = vpop.f32.mrf.mxu0
    %1572 = vdwg.mxu0
    %1573 = vmatpush.bf16.msra.mxu0 %v992
    %1574 = vmatpush.bf16.msra.mxu0 %v988
    %1575 = vmatpush.bf16.msra.mxu0 %v984
    %1576 = vmatpush.bf16.msra.mxu0 %v980
    %1577 = vmatpush.bf16.msra.mxu0 %v976
    %1578 = vmatpush.bf16.msra.mxu0 %v972
    %1579 = vmatpush.bf16.msra.mxu0 %v968
    %1580 = vmatpush.bf16.msra.mxu0 %v964
    %1581 = vmatmul.bf16.gmra.mxu0 %v267
    %v1582 = vpop.f32.mrf.mxu0
    %v1583 = vadd.f32 %v1570, %v1582
    %v1584 = vpop.f32.mrf.mxu0
    %1585 = vdwg.mxu0
    %1586 = vmatpush.bf16.msra.mxu0 %v1024
    %1587 = vmatpush.bf16.msra.mxu0 %v1020
    %1588 = vmatpush.bf16.msra.mxu0 %v1016
    %1589 = vmatpush.bf16.msra.mxu0 %v1012
    %1590 = vmatpush.bf16.msra.mxu0 %v1008
    %1591 = vmatpush.bf16.msra.mxu0 %v1004
    %1592 = vmatpush.bf16.msra.mxu0 %v1000
    %1593 = vmatpush.bf16.msra.mxu0 %v996
    %1594 = vmatmul.bf16.gmra.mxu0 %v268
    %v1595 = vpop.f32.mrf.mxu0
    %v1596 = vadd.f32 %v1583, %v1595
    %v1597 = vpop.f32.mrf.mxu0
    %1598 = vdwg.mxu0
    %1599 = vmatpush.bf16.msra.mxu0 %v1056
    %1600 = vmatpush.bf16.msra.mxu0 %v1052
    %1601 = vmatpush.bf16.msra.mxu0 %v1048
    %1602 = vmatpush.bf16.msra.mxu0 %v1044
    %1603 = vmatpush.bf16.msra.mxu0 %v1040
    %1604 = vmatpush.bf16.msra.mxu0 %v1036
    %1605 = vmatpush.bf16.msra.mxu0 %v1032
    %1606 = vmatpush.bf16.msra.mxu0 %v1028
    %1607 = vmatmul.bf16.gmra.mxu0 %v269
    %v1608 = vpop.f32.mrf.mxu0
    %v1609 = vadd.f32 %v1596, %v1608
    %v1610 = vpop.f32.mrf.mxu0
    %1611 = vdwg.mxu0
    %1612 = vmatpush.bf16.msra.mxu0 0
    %1613 = vmatpush.bf16.msra.mxu0 0
    %1614 = vmatpush.bf16.msra.mxu0 0
    %1615 = vmatpush.bf16.msra.mxu0 0
    %1616 = vmatpush.bf16.msra.mxu0 0
    %1617 = vmatpush.bf16.msra.mxu0 0
    %1618 = vmatpush.bf16.msra.mxu0 0
    %1619 = vmatpush.bf16.msra.mxu0 %v1060
    %1620 = vmatmul.bf16.gmra.mxu0 %v1259
    %v1621 = vpop.f32.mrf.mxu0
    %v1622 = vadd.f32 %v1609, %v1621
    %v1623 = vpop.f32.mrf.mxu0
    %1624 = vdwg.mxu0
    %v1625 = vmax.f32 %v1349, 0.0
    %v1626 = vmax.f32 %v1440, 0.0
    %v1627 = vmax.f32 %v1531, 0.0
    %v1628 = vmax.f32 %v1622, 0.0
    %v1629 = vpack.c.bf16 %v1625, %v1625
    %v1630 = vpack.c.bf16 %v1626, %v1626
    %v1631 = vpack.c.bf16 %v1627, %v1627
    %v1632 = vpack.c.bf16 %v1628, %v1628
    %v1633 = vld [vmem:[%s3] sm:$0xf]
    %v1634 = vld [vmem:[%s3 + $0x4] sm:$0xf]
    %v1635 = vld [vmem:[%s3 + $0x8] sm:$0xf]
    %v1636 = vld [vmem:[%s3 + $0xc] sm:$0xf]
    %v1637 = vld [vmem:[%s3 + $0x10] sm:$0xf]
    %v1638 = vld [vmem:[%s3 + $0x14] sm:$0xf]
    %v1639 = vld [vmem:[%s3 + $0x18] sm:$0xf]
    %v1640 = vld [vmem:[%s3 + $0x1c] sm:$0xf]
    %v1641 = vld [vmem:[%s3 + $0x20] sm:$0xf]
    %v1642 = vld [vmem:[%s3 + $0x24] sm:$0xf]
    %v1643 = vld [vmem:[%s3 + $0x28] sm:$0xf]
    %v1644 = vld [vmem:[%s3 + $0x2c] sm:$0xf]
    %v1645 = vld [vmem:[%s3 + $0x30] sm:$0xf]
    %v1646 = vld [vmem:[%s3 + $0x34] sm:$0xf]
    %v1647 = vld [vmem:[%s3 + $0x38] sm:$0xf]
    %v1648 = vld [vmem:[%s3 + $0x3c] sm:$0xf]
    %v1649 = vld [vmem:[%s3 + $0x40] sm:$0xf]
    %v1650 = vld [vmem:[%s3 + $0x44] sm:$0xf]
    %v1651 = vld [vmem:[%s3 + $0x48] sm:$0xf]
    %v1652 = vld [vmem:[%s3 + $0x4c] sm:$0xf]
    %v1653 = vld [vmem:[%s3 + $0x50] sm:$0xf]
    %v1654 = vld [vmem:[%s3 + $0x54] sm:$0xf]
    %v1655 = vld [vmem:[%s3 + $0x58] sm:$0xf]
    %v1656 = vld [vmem:[%s3 + $0x5c] sm:$0xf]
    %v1657 = vld [vmem:[%s3 + $0x60] sm:$0xf]
    %v1658 = vld [vmem:[%s3 + $0x64] sm:$0xf]
    %v1659 = vld [vmem:[%s3 + $0x68] sm:$0xf]
    %v1660 = vld [vmem:[%s3 + $0x6c] sm:$0xf]
    %v1661 = vld [vmem:[%s3 + $0x70] sm:$0xf]
    %v1662 = vld [vmem:[%s3 + $0x74] sm:$0xf]
    %v1663 = vld [vmem:[%s3 + $0x78] sm:$0xf]
    %v1664 = vld [vmem:[%s3 + $0x7c] sm:$0xf]
    %v1665 = vld [vmem:[%s3 + $0x80] sm:$0xf]
    %v1666 = vld [vmem:[%s3 + $0x84] sm:$0xf]
    %v1667 = vld [vmem:[%s3 + $0x88] sm:$0xf]
    %v1668 = vld [vmem:[%s3 + $0x8c] sm:$0xf]
    %v1669 = vld [vmem:[%s3 + $0x90] sm:$0xf]
    %v1670 = vld [vmem:[%s3 + $0x94] sm:$0xf]
    %v1671 = vld [vmem:[%s3 + $0x98] sm:$0xf]
    %v1672 = vld [vmem:[%s3 + $0x9c] sm:$0xf]
    %v1673 = vld [vmem:[%s3 + $0xa0] sm:$0xf]
    %v1674 = vld [vmem:[%s3 + $0xa4] sm:$0xf]
    %v1675 = vld [vmem:[%s3 + $0xa8] sm:$0xf]
    %v1676 = vld [vmem:[%s3 + $0xac] sm:$0xf]
    %v1677 = vld [vmem:[%s3 + $0xb0] sm:$0xf]
    %v1678 = vld [vmem:[%s3 + $0xb4] sm:$0xf]
    %v1679 = vld [vmem:[%s3 + $0xb8] sm:$0xf]
    %v1680 = vld [vmem:[%s3 + $0xbc] sm:$0xf]
    %v1681 = vld [vmem:[%s3 + $0xc0] sm:$0xf]
    %v1682 = vld [vmem:[%s3 + $0xc4] sm:$0xf]
    %v1683 = vld [vmem:[%s3 + $0xc8] sm:$0xf]
    %v1684 = vld [vmem:[%s3 + $0xcc] sm:$0xf]
    %v1685 = vld [vmem:[%s3 + $0xd0] sm:$0xf]
    %v1686 = vld [vmem:[%s3 + $0xd4] sm:$0xf]
    %v1687 = vld [vmem:[%s3 + $0xd8] sm:$0xf]
    %v1688 = vld [vmem:[%s3 + $0xdc] sm:$0xf]
    %v1689 = vld [vmem:[%s3 + $0xe0] sm:$0xf]
    %v1690 = vld [vmem:[%s3 + $0xe4] sm:$0xf]
    %v1691 = vld [vmem:[%s3 + $0xe8] sm:$0xf]
    %v1692 = vld [vmem:[%s3 + $0xec] sm:$0xf]
    %v1693 = vld [vmem:[%s3 + $0xf0] sm:$0xf]
    %v1694 = vld [vmem:[%s3 + $0xf4] sm:$0xf]
    %v1695 = vld [vmem:[%s3 + $0xf8] sm:$0xf]
    %v1696 = vld [vmem:[%s3 + $0xfc] sm:$0xf]
    %v1697 = vld [vmem:[%s4] sm:$0x1]
    %v1699 = vperm.slane %v1697, 0
    %v1765 = vunpack.c.l.b16 %v1633
    %v1766 = vunpack.c.l.b16 %v1634
    %v1767 = vunpack.c.l.b16 %v1635
    %v1768 = vunpack.c.l.b16 %v1636
    %v1769 = vunpack.c.l.b16 %v1637
    %v1770 = vunpack.c.l.b16 %v1638
    %v1771 = vunpack.c.l.b16 %v1639
    %v1772 = vunpack.c.l.b16 %v1640
    %v1773 = vunpack.c.l.b16 %v1641
    %v1774 = vunpack.c.l.b16 %v1642
    %v1775 = vunpack.c.l.b16 %v1643
    %v1776 = vunpack.c.l.b16 %v1644
    %v1777 = vunpack.c.l.b16 %v1645
    %v1778 = vunpack.c.l.b16 %v1646
    %v1779 = vunpack.c.l.b16 %v1647
    %v1780 = vunpack.c.l.b16 %v1648
    %v1781 = vunpack.c.l.b16 %v1649
    %v1782 = vunpack.c.l.b16 %v1650
    %v1783 = vunpack.c.l.b16 %v1651
    %v1784 = vunpack.c.l.b16 %v1652
    %v1785 = vunpack.c.l.b16 %v1653
    %v1786 = vunpack.c.l.b16 %v1654
    %v1787 = vunpack.c.l.b16 %v1655
    %v1788 = vunpack.c.l.b16 %v1656
    %v1789 = vunpack.c.l.b16 %v1657
    %v1790 = vunpack.c.l.b16 %v1658
    %v1791 = vunpack.c.l.b16 %v1659
    %v1792 = vunpack.c.l.b16 %v1660
    %v1793 = vunpack.c.l.b16 %v1661
    %v1794 = vunpack.c.l.b16 %v1662
    %v1795 = vunpack.c.l.b16 %v1663
    %v1796 = vunpack.c.l.b16 %v1664
    %v1797 = vunpack.c.l.b16 %v1665
    %v1798 = vunpack.c.l.b16 %v1666
    %v1799 = vunpack.c.l.b16 %v1667
    %v1800 = vunpack.c.l.b16 %v1668
    %v1801 = vunpack.c.l.b16 %v1669
    %v1802 = vunpack.c.l.b16 %v1670
    %v1803 = vunpack.c.l.b16 %v1671
    %v1804 = vunpack.c.l.b16 %v1672
    %v1805 = vunpack.c.l.b16 %v1673
    %v1806 = vunpack.c.l.b16 %v1674
    %v1807 = vunpack.c.l.b16 %v1675
    %v1808 = vunpack.c.l.b16 %v1676
    %v1809 = vunpack.c.l.b16 %v1677
    %v1810 = vunpack.c.l.b16 %v1678
    %v1811 = vunpack.c.l.b16 %v1679
    %v1812 = vunpack.c.l.b16 %v1680
    %v1813 = vunpack.c.l.b16 %v1681
    %v1814 = vunpack.c.l.b16 %v1682
    %v1815 = vunpack.c.l.b16 %v1683
    %v1816 = vunpack.c.l.b16 %v1684
    %v1817 = vunpack.c.l.b16 %v1685
    %v1818 = vunpack.c.l.b16 %v1686
    %v1819 = vunpack.c.l.b16 %v1687
    %v1820 = vunpack.c.l.b16 %v1688
    %v1821 = vunpack.c.l.b16 %v1689
    %v1822 = vunpack.c.l.b16 %v1690
    %v1823 = vunpack.c.l.b16 %v1691
    %v1824 = vunpack.c.l.b16 %v1692
    %v1825 = vunpack.c.l.b16 %v1693
    %v1826 = vunpack.c.l.b16 %v1694
    %v1827 = vunpack.c.l.b16 %v1695
    %v1828 = vunpack.c.l.b16 %v1696
    %v1829 = vpack.c.b16 %v1766, %v1765
    %v1830 = vpack.c.b16 %v1768, %v1767
    %v1831 = vpack.c.b16 %v1770, %v1769
    %v1832 = vpack.c.b16 %v1772, %v1771
    %v1833 = vpack.c.b16 %v1774, %v1773
    %v1834 = vpack.c.b16 %v1776, %v1775
    %v1835 = vpack.c.b16 %v1778, %v1777
    %v1836 = vpack.c.b16 %v1780, %v1779
    %v1837 = vpack.c.b16 %v1782, %v1781
    %v1838 = vpack.c.b16 %v1784, %v1783
    %v1839 = vpack.c.b16 %v1786, %v1785
    %v1840 = vpack.c.b16 %v1788, %v1787
    %v1841 = vpack.c.b16 %v1790, %v1789
    %v1842 = vpack.c.b16 %v1792, %v1791
    %v1843 = vpack.c.b16 %v1794, %v1793
    %v1844 = vpack.c.b16 %v1796, %v1795
    %v1845 = vpack.c.b16 %v1798, %v1797
    %v1846 = vpack.c.b16 %v1800, %v1799
    %v1847 = vpack.c.b16 %v1802, %v1801
    %v1848 = vpack.c.b16 %v1804, %v1803
    %v1849 = vpack.c.b16 %v1806, %v1805
    %v1850 = vpack.c.b16 %v1808, %v1807
    %v1851 = vpack.c.b16 %v1810, %v1809
    %v1852 = vpack.c.b16 %v1812, %v1811
    %v1853 = vpack.c.b16 %v1814, %v1813
    %v1854 = vpack.c.b16 %v1816, %v1815
    %v1855 = vpack.c.b16 %v1818, %v1817
    %v1856 = vpack.c.b16 %v1820, %v1819
    %v1857 = vpack.c.b16 %v1822, %v1821
    %v1858 = vpack.c.b16 %v1824, %v1823
    %v1859 = vpack.c.b16 %v1826, %v1825
    %v1860 = vpack.c.b16 %v1828, %v1827
    %1893 = vmatpush.bf16.msra.mxu0 %v1836
    %1894 = vmatpush.bf16.msra.mxu0 %v1835
    %1895 = vmatpush.bf16.msra.mxu0 %v1834
    %1896 = vmatpush.bf16.msra.mxu0 %v1833
    %1897 = vmatpush.bf16.msra.mxu0 %v1832
    %1898 = vmatpush.bf16.msra.mxu0 %v1831
    %1899 = vmatpush.bf16.msra.mxu0 %v1830
    %1900 = vmatpush.bf16.msra.mxu0 %v1829
    %1901 = vmatmul.bf16.gmra.mxu0 %v1629
    %v1902 = vpop.f32.mrf.mxu0
    %v1903 = vadd.f32 %v1699, %v1902
    %v1904 = vpop.f32.mrf.mxu0
    %1905 = vdwg.mxu0
    %1906 = vmatpush.bf16.msra.mxu0 %v1844
    %1907 = vmatpush.bf16.msra.mxu0 %v1843
    %1908 = vmatpush.bf16.msra.mxu0 %v1842
    %1909 = vmatpush.bf16.msra.mxu0 %v1841
    %1910 = vmatpush.bf16.msra.mxu0 %v1840
    %1911 = vmatpush.bf16.msra.mxu0 %v1839
    %1912 = vmatpush.bf16.msra.mxu0 %v1838
    %1913 = vmatpush.bf16.msra.mxu0 %v1837
    %1914 = vmatmul.bf16.gmra.mxu0 %v1630
    %v1915 = vpop.f32.mrf.mxu0
    %v1916 = vadd.f32 %v1903, %v1915
    %v1917 = vpop.f32.mrf.mxu0
    %1918 = vdwg.mxu0
    %1919 = vmatpush.bf16.msra.mxu0 %v1852
    %1920 = vmatpush.bf16.msra.mxu0 %v1851
    %1921 = vmatpush.bf16.msra.mxu0 %v1850
    %1922 = vmatpush.bf16.msra.mxu0 %v1849
    %1923 = vmatpush.bf16.msra.mxu0 %v1848
    %1924 = vmatpush.bf16.msra.mxu0 %v1847
    %1925 = vmatpush.bf16.msra.mxu0 %v1846
    %1926 = vmatpush.bf16.msra.mxu0 %v1845
    %1927 = vmatmul.bf16.gmra.mxu0 %v1631
    %v1928 = vpop.f32.mrf.mxu0
    %v1929 = vadd.f32 %v1916, %v1928
    %v1930 = vpop.f32.mrf.mxu0
    %1931 = vdwg.mxu0
    %1932 = vmatpush.bf16.msra.mxu0 %v1860
    %1933 = vmatpush.bf16.msra.mxu0 %v1859
    %1934 = vmatpush.bf16.msra.mxu0 %v1858
    %1935 = vmatpush.bf16.msra.mxu0 %v1857
    %1936 = vmatpush.bf16.msra.mxu0 %v1856
    %1937 = vmatpush.bf16.msra.mxu0 %v1855
    %1938 = vmatpush.bf16.msra.mxu0 %v1854
    %1939 = vmatpush.bf16.msra.mxu0 %v1853
    %1940 = vmatmul.bf16.gmra.mxu0 %v1632
    %v1941 = vpop.f32.mrf.mxu0
    %v1942 = vadd.f32 %v1929, %v1941
    %v1943 = vpop.f32.mrf.mxu0
    %1944 = vdwg.mxu0
    %v1945 = vmul.f32 %v1942, 1.442695
    %v1946 = vpow.pop %v1945
    %v1947 = vld [vmem:[%s5] sm:$0xff]
    %1949 = vrot.lane.b32.xlu0 %v1947, 16
    %v1950 = vpop.permute.xlu0 %1949
    %v1952 = vmul.f32 %v1946, %v1950
    %1954 = vrot.lane.b32.xlu0 %v1952, 112
    %v1955 = vpop.permute.xlu0 %1954
    %v1957 = vadd.f32 %v1942, %v1955
    %1958 = vst.msk [vmem:[#allocation5] sm:$0xff] %vm1257, %v1957
    %v1959 = vmul.f32 %v1946, %v1946
    %v1960 = vmul.f32 %v1942, %v1942
    %1962 = vrot.lane.b32.xlu0 %v1960, 16
    %v1963 = vpop.permute.xlu0 %1962
    %v1965 = vadd.f32 %v1959, %v1963
    %v1966 = vsub.f32 %v1965, %v1942
    %v1967 = vsub.f32 %v1966, 0.5
    %1969 = vrot.lane.b32.xlu0 %v1967, 112
    %v1970 = vpop.permute.xlu0 %1969
    %v1972 = vsel %vm1257, %v1970, 0.0
    %1973 = vadd.xlane.f32.xlu0 %v1972
    %v1974 = vpop.xlane.xlu0 %1973
    %vm1975 = vcmask 7168
    %1976 = vst.msk [vmem:[%s7] sm:$0xff] %vm1975, %v1974
    // Predicated region
    $region30: #{tpu_custom_call.1} parent=1 // pred_check
      _
    $region31: #{tpu_custom_call.1} parent=1 // pred_check_branch
      %1978 = sbr.rel (0) target = $region33
    $region32: #{tpu_custom_call.1} parent=1 // pred_region
      %1980 = vsyncadd [#allocation4], 0
      %s1982 = sshll.u32 [#allocation5], 4
      %s1983 = int_to_ptr.vmem [resolvable:$true] %s1982
      %s1984 = sshll.u32 %s6, 4
      %s1985 = int_to_ptr.hbm [resolvable:$true] %s1984
      %1987 = dma.vmem_to_hbm [thread:$0]  %s1983, 128, %s1985, [#allocation4]
    $region33: #{tpu_custom_call.1} parent=1 // pred_fallthru
      _
    // Predicated region
    $region34: #{tpu_custom_call.1} parent=1 // pred_check
      _
    $region35: #{tpu_custom_call.1} parent=1 // pred_check_branch
      %1989 = sbr.rel (0) target = $region37
    $region36: #{tpu_custom_call.1} parent=1 // pred_region
      _
    $region37: #{tpu_custom_call.1} parent=1 // pred_fallthru
      _
    // Predicated region
    $region38: #{tpu_custom_call.1} parent=1 // pred_check
      _
    $region39: #{tpu_custom_call.1} parent=1 // pred_check_branch
      %1991 = sbr.rel (0) target = $region41
    $region40: #{tpu_custom_call.1} parent=1 // pred_region
      %1993 = dma.done [#allocation4], 128
    $region41: #{tpu_custom_call.1} parent=1 // pred_fallthru
      _
    // Predicated region
    $region42: #{tpu_custom_call.1} parent=1 // pred_check
      _
    $region43: #{tpu_custom_call.1} parent=1 // pred_check_branch
      %1995 = sbr.rel (0) target = $region45
    $region44: #{tpu_custom_call.1} parent=1 // pred_region
      _
    $region45: #{tpu_custom_call.1} parent=1 // pred_fallthru
      _
    %1996 = vsyncpa [#allocation3], 1
    %1997 = vsyncpa [#allocation4], 1

</llo_original>
